<compile_context>
chip_gen: v7x
topology: tpu7x:2x2x1
jax: 0.10.0
libtpu: 0.0.40
codegen_flags: <defaults>
</compile_context>

<pallas_src>
import math
import numpy as np
import jax
import jax.numpy as jnp
from jax import lax
from jax.experimental import pallas as pl
from jax.experimental.pallas import tpu as pltpu

INPLANES = 16     # inplanes
PLANES = 8        # planes
TEMPERATURE = 1.0
SCALE = math.sqrt(PLANES)           # self.scale = sqrt(planes)

# rhs-transposed matmul (contract last dim of both operands) — flash-attention
# proven dimension numbers on Mosaic.
_NT_DIMS = (((1,), (1,)), ((), ()))


def _choose_tq(n):
    """Lane-aligned query-tile width; bounds VMEM to O(TQ * N) for large N."""
    for tq in (512, 256, 128):
        if tq < n and n % tq == 0:
            return tq
    if n > 512:
        return 256   # ragged last tile; Pallas masks the out-of-bounds stores
    return n         # single full-width block (small or non-128-multiple N)


def _nonlocal_kernel(xall_ref, xq_ref, wq_ref, wkvm_ref, bkvm_ref,
                     wog_ref, wob_ref, o_ref):
    P = PLANES
    xf = xall_ref[0].astype(jnp.float32)       # (C, N)   full spatial slab (keys/values/mask)
    xq = xq_ref[0].astype(jnp.float32)         # (C, TQ)  this query tile / residual

    # 'channel' whitening: subtracting the per-channel spatial mean of x before
    # the query/key projection equals subtracting mean(query)/mean(key); the
    # conv biases cancel for the query path.
    x_mean = jnp.mean(xf, axis=-1, keepdims=True)                        # (C, 1)

    # One stacked 1x1-conv for [key | value | ones-row | mask] over the full slab.
    proj = jnp.dot(wkvm_ref[...], xf,
                   preferred_element_type=jnp.float32) + bkvm_ref[...]   # (3P, N)
    proj_mu = jnp.dot(wkvm_ref[...], x_mean,
                      preferred_element_type=jnp.float32) + bkvm_ref[...]  # (3P, 1)

    key_c     = proj[0:P] - proj_mu[0:P]          # (P, N)   centered key
    value_aug = proj[P:2 * P + 1]                 # (P+1, N) value rows + ones row
    value     = value_aug[0:P]                    # (P, N)
    mask      = proj[2 * P + 1:2 * P + 2]         # (1, N)   conv_mask logits

    # Query projection on this tile only; 1/(scale*temperature) folded into wq,
    # bias dropped (cancels under 'channel' whitening).
    q_c = jnp.dot(wq_ref[...], xq - x_mean,
                  preferred_element_type=jnp.float32)                    # (P, TQ)

    # Scores, lane-dense (TQ, N).  Only the tiny (P, TQ) tile is transposed
    # (negligible XLU work); the big intermediates never change layout.
    sim = jnp.dot(q_c.T, key_c, preferred_element_type=jnp.float32)      # (TQ, N)
    p = jnp.exp(sim - jnp.max(sim, axis=-1, keepdims=True))              # un-normalised

    # Attention output and softmax row-sums in ONE bf16 matmul (f32 accumulate):
    # contracting the key axis of value_aug and p gives (P+1, TQ), lane-dense;
    # the appended ones-row of value_aug yields the per-query row sums.
    out_aug = lax.dot_general(value_aug.astype(jnp.bfloat16),
                              p.astype(jnp.bfloat16),
                              _NT_DIMS,
                              preferred_element_type=jnp.float32)        # (P+1, TQ)
    out_sim = out_aug[0:P] * pl.reciprocal(out_aug[P:P + 1], approx=True)

    # Global-context branch, same deferred-normalisation trick.
    pm = jnp.exp(mask - jnp.max(mask, axis=-1, keepdims=True))           # (1, N)
    gc_u = lax.dot_general(value, pm, _NT_DIMS,
                           preferred_element_type=jnp.float32)           # (P, 1)
    gc = gc_u * pl.reciprocal(jnp.sum(pm, axis=-1, keepdims=True), approx=True)

    # conv_out with gamma / beta pre-folded into its weight, plus residual.
    out = (jnp.dot(wog_ref[...], out_sim, preferred_element_type=jnp.float32)
           + jnp.dot(wob_ref[...], gc, preferred_element_type=jnp.float32)
           + xq)                                                         # (C, TQ)
    o_ref[0] = out.astype(o_ref.dtype)


def nonlocal_forward(x, params):
    B, C, H, W = x.shape
    assert C == INPLANES
    N = H * W
    P = PLANES
    xf = x.reshape(B, C, N)

    TQ = _choose_tq(N)
    nq = pl.cdiv(N, TQ)

    # ---- host-side parameter folding / packing (tiny, once per call) ----
    wq_s = params["wq"] * (1.0 / (SCALE * TEMPERATURE))       # scale folded into wq
    wkvm = jnp.concatenate(
        [params["wk"],                                        # rows 0..P-1   : key
         params["wv"],                                        # rows P..2P-1  : value
         jnp.zeros((1, C), jnp.float32),                      # row  2P       : ones row (bias=1)
         params["wm"],                                        # row  2P+1     : mask
         jnp.zeros((P - 2, C), jnp.float32)], axis=0)         # pad to 3P rows
    bkvm = jnp.concatenate(
        [params["bk"], params["bv"],
         jnp.ones((1, 1), jnp.float32),
         params["bm"],
         jnp.zeros((P - 2, 1), jnp.float32)], axis=0)         # (3P, 1)
    wout_g = params["gamma"][0, 0] * params["wout"]           # (C, P) gamma-folded conv_out
    wout_b = params["beta"][0, 0] * params["wout"]            # (C, P) beta-folded  conv_out
    # NOTE: conv_query's bias is not passed: it cancels under 'channel' whitening.

    def w_spec(shape):
        return pl.BlockSpec(shape, lambda b, qi: (0, 0))

    out = pl.pallas_call(
        _nonlocal_kernel,
        out_shape=jax.ShapeDtypeStruct((B, C, N), x.dtype),
        grid=(B, nq),
        in_specs=[
            pl.BlockSpec((1, C, N),  lambda b, qi: (b, 0, 0)),   # x full slab (re-used across q tiles)
            pl.BlockSpec((1, C, TQ), lambda b, qi: (b, 0, qi)),  # x query tile / residual
            w_spec((P, C)),           # wq (scale folded)
            w_spec((3 * P, C)),       # stacked wk | wv | ones | wm
            w_spec((3 * P, 1)),       # stacked biases
            w_spec((C, P)),           # gamma * wout
            w_spec((C, P)),           # beta  * wout
        ],
        out_specs=pl.BlockSpec((1, C, TQ), lambda b, qi: (b, 0, qi)),
        compiler_params=pltpu.CompilerParams(
            dimension_semantics=("parallel", "parallel")),
    )(xf, xf, wq_s, wkvm, bkvm, wout_g, wout_b)
    # TODO(synk): for extremely large N a second (KV) tiling level with online
    # softmax would bound VMEM to O(TQ*TKV); not needed for typical non-local
    # block feature maps.
    return out.reshape(B, C, H, W)


def reference_forward(x, params):
    """Pure-JAX reference mirroring the PyTorch forward."""
    B, C, H, W = x.shape
    N = H * W
    xf = x.reshape(B, C, N).astype(jnp.float32)
    q = jnp.einsum("pc,bcn->bpn", params["wq"], xf) + params["bq"][None]
    k = jnp.einsum("pc,bcn->bpn", params["wk"], xf) + params["bk"][None]
    v = jnp.einsum("pc,bcn->bpn", params["wv"], xf) + params["bv"][None]
    q = q - q.mean(axis=2, keepdims=True)
    k = k - k.mean(axis=2, keepdims=True)
    sim = jnp.einsum("bpn,bpm->bnm", q, k) / SCALE / TEMPERATURE
    sim = jax.nn.softmax(sim, axis=2)
    out_sim = jnp.einsum("bnm,bpm->bpn", sim, v)
    m = jnp.einsum("oc,bcn->bon", params["wm"], xf) + params["bm"][None]
    m = jax.nn.softmax(m, axis=2)
    out_gc = jnp.einsum("bpn,bon->bpo", v, m)                    # (B, P, 1)
    comb = params["gamma"][0, 0] * out_sim + params["beta"][0, 0] * out_gc
    out = jnp.einsum("cp,bpn->bcn", params["wout"], comb) + xf
    return out.reshape(B, C, H, W)


def init_params(key):
    ks = jax.random.split(key, 6)
    std = 0.01  # init.normal_(m.weight, 0, 0.01); biases zero
    params = {
        "wq":   std * jax.random.normal(ks[0], (PLANES, INPLANES), jnp.float32),
        "bq":   jnp.zeros((PLANES, 1), jnp.float32),
        "wk":   std * jax.random.normal(ks[1], (PLANES, INPLANES), jnp.float32),
        "bk":   jnp.zeros((PLANES, 1), jnp.float32),
        "wv":   std * jax.random.normal(ks[2], (PLANES, INPLANES), jnp.float32),
        "bv":   jnp.zeros((PLANES, 1), jnp.float32),
        "wm":   std * jax.random.normal(ks[3], (1, INPLANES), jnp.float32),
        "bm":   jnp.zeros((1, 1), jnp.float32),
        "wout": std * jax.random.normal(ks[4], (INPLANES, PLANES), jnp.float32),
        # PyTorch initializes gamma/beta to 0 (which zeroes the attention path);
        # use deterministic non-zero values so the kernel path is exercised.
        "gamma": jnp.full((1, 1), 0.5, jnp.float32),
        "beta":  jnp.full((1, 1), 0.25, jnp.float32),
    }
    return params


if __name__ == "__main__":
    key = jax.random.PRNGKey(0)
    kx, kp = jax.random.split(key)
    B, H, W = 2, 16, 16
    x = jax.random.normal(kx, (B, INPLANES, H, W), jnp.float32)   # NCHW, N=256 -> 2 q-tiles
    params = init_params(kp)

    out = jax.block_until_ready(nonlocal_forward(x, params))
    ref = reference_forward(x, params)
    assert out.shape == (B, INPLANES, H, W)
    # bf16 attention matmul + approx reciprocals contribute <1e-6 at the output
    # (residual-dominated); 2e-5 keeps the check tight with margin.
    np.testing.assert_allclose(np.asarray(out), np.asarray(ref),
                               rtol=2e-5, atol=2e-5)
    print("KERNEL_OK")
</pallas_src>

<mosaic_0001>
module attributes {stable_mosaic.version = 11 : i64} {
  func.func @_nonlocal_kernel(%arg0: i32, %arg1: i32, %arg2: memref<1x16x256xf32, #tpu.memory_space<vmem>>, %arg3: memref<1x16x128xf32, #tpu.memory_space<vmem>>, %arg4: memref<8x16xf32, #tpu.memory_space<vmem>>, %arg5: memref<24x16xf32, #tpu.memory_space<vmem>>, %arg6: memref<24x1xf32, #tpu.memory_space<vmem>>, %arg7: memref<16x8xf32, #tpu.memory_space<vmem>>, %arg8: memref<16x8xf32, #tpu.memory_space<vmem>>, %arg9: memref<1x16x128xf32, #tpu.memory_space<vmem>>) attributes {dimension_semantics = [#tpu.dimension_semantics<parallel>, #tpu.dimension_semantics<parallel>], iteration_bounds = array<i64: 2, 2>, scalar_prefetch = 0 : i64, scratch_operands = 0 : i64, tpu.core_type = #tpu.core_type<tc>, window_params = [{transform_indices = @transform_0, window_bounds = array<i64: 1, 16, 256>}, {transform_indices = @transform_1, window_bounds = array<i64: 1, 16, 128>}, {pipeline_mode = #tpu.pipeline_mode<synchronous>, transform_indices = @transform_2, window_bounds = array<i64: 8, 16>}, {pipeline_mode = #tpu.pipeline_mode<synchronous>, transform_indices = @transform_3, window_bounds = array<i64: 24, 16>}, {pipeline_mode = #tpu.pipeline_mode<synchronous>, transform_indices = @transform_4, window_bounds = array<i64: 24, 1>}, {pipeline_mode = #tpu.pipeline_mode<synchronous>, transform_indices = @transform_5, window_bounds = array<i64: 16, 8>}, {pipeline_mode = #tpu.pipeline_mode<synchronous>, transform_indices = @transform_6, window_bounds = array<i64: 16, 8>}, {transform_indices = @transform_7, window_bounds = array<i64: 1, 16, 128>}]} {
    %c0 = arith.constant 0 : index
    %c0_0 = arith.constant 0 : index
    %c0_1 = arith.constant 0 : index
    %0 = vector.load %arg2[%c0, %c0_0, %c0_1] : memref<1x16x256xf32, #tpu.memory_space<vmem>>, vector<1x16x256xf32>
    %1 = vector.shape_cast %0 : vector<1x16x256xf32> to vector<16x256xf32>
    %c0_2 = arith.constant 0 : index
    %c0_3 = arith.constant 0 : index
    %c0_4 = arith.constant 0 : index
    %2 = vector.load %arg3[%c0_2, %c0_3, %c0_4] : memref<1x16x128xf32, #tpu.memory_space<vmem>>, vector<1x16x128xf32>
    %3 = vector.shape_cast %2 : vector<1x16x128xf32> to vector<16x128xf32>
    %cst = arith.constant dense<0.000000e+00> : vector<16xf32>
    %4 = vector.multi_reduction <add>, %1, %cst [1] : vector<16x256xf32> to vector<16xf32>
    %5 = vector.shape_cast %4 : vector<16xf32> to vector<16x1xf32>
    %cst_5 = arith.constant 2.560000e+02 : f32
    %6 = vector.broadcast %cst_5 : f32 to vector<16x1xf32>
    %7 = arith.divf %5, %6 : vector<16x1xf32>
    %c0_6 = arith.constant 0 : index
    %c0_7 = arith.constant 0 : index
    %8 = vector.load %arg5[%c0_6, %c0_7] : memref<24x16xf32, #tpu.memory_space<vmem>>, vector<24x16xf32>
    %cst_8 = arith.constant dense<0.000000e+00> : vector<24x256xf32>
    %9 = tpu.matmul %8, %1, %cst_8 {dimension_numbers = #tpu.dot_dimension_numbers<[1], [0], [0], [1], [0, 0, 1, 1], [], []>} : vector<24x16xf32>, vector<16x256xf32>, vector<24x256xf32> -> vector<24x256xf32>
    %c0_9 = arith.constant 0 : index
    %c0_10 = arith.constant 0 : index
    %10 = vector.load %arg6[%c0_9, %c0_10] : memref<24x1xf32, #tpu.memory_space<vmem>>, vector<24x1xf32>
    %11 = vector.broadcast %10 : vector<24x1xf32> to vector<24x256xf32>
    %12 = arith.addf %9, %11 : vector<24x256xf32>
    %c0_11 = arith.constant 0 : index
    %c0_12 = arith.constant 0 : index
    %13 = vector.load %arg5[%c0_11, %c0_12] : memref<24x16xf32, #tpu.memory_space<vmem>>, vector<24x16xf32>
    %cst_13 = arith.constant dense<0.000000e+00> : vector<24x1xf32>
    %14 = tpu.matmul %13, %7, %cst_13 {dimension_numbers = #tpu.dot_dimension_numbers<[1], [0], [0], [1], [0, 0, 1, 1], [], []>} : vector<24x16xf32>, vector<16x1xf32>, vector<24x1xf32> -> vector<24x1xf32>
    %c0_14 = arith.constant 0 : index
    %c0_15 = arith.constant 0 : index
    %15 = vector.load %arg6[%c0_14, %c0_15] : memref<24x1xf32, #tpu.memory_space<vmem>>, vector<24x1xf32>
    %16 = arith.addf %14, %15 : vector<24x1xf32>
    %17 = vector.extract_strided_slice %12 {offsets = [0, 0], sizes = [8, 256], strides = [1, 1]} : vector<24x256xf32> to vector<8x256xf32>
    %18 = vector.extract_strided_slice %16 {offsets = [0, 0], sizes = [8, 1], strides = [1, 1]} : vector<24x1xf32> to vector<8x1xf32>
    %19 = vector.broadcast %18 : vector<8x1xf32> to vector<8x256xf32>
    %20 = arith.subf %17, %19 : vector<8x256xf32>
    %21 = vector.extract_strided_slice %12 {offsets = [8, 0], sizes = [9, 256], strides = [1, 1]} : vector<24x256xf32> to vector<9x256xf32>
    %22 = vector.extract_strided_slice %21 {offsets = [0, 0], sizes = [8, 256], strides = [1, 1]} : vector<9x256xf32> to vector<8x256xf32>
    %23 = vector.extract_strided_slice %12 {offsets = [17, 0], sizes = [1, 256], strides = [1, 1]} : vector<24x256xf32> to vector<1x256xf32>
    %c0_16 = arith.constant 0 : index
    %c0_17 = arith.constant 0 : index
    %24 = vector.load %arg4[%c0_16, %c0_17] : memref<8x16xf32, #tpu.memory_space<vmem>>, vector<8x16xf32>
    %25 = vector.broadcast %7 : vector<16x1xf32> to vector<16x128xf32>
    %26 = arith.subf %3, %25 : vector<16x128xf32>
    %cst_18 = arith.constant dense<0.000000e+00> : vector<8x128xf32>
    %27 = tpu.matmul %24, %26, %cst_18 {dimension_numbers = #tpu.dot_dimension_numbers<[1], [0], [0], [1], [0, 0, 1, 1], [], []>} : vector<8x16xf32>, vector<16x128xf32>, vector<8x128xf32> -> vector<8x128xf32>
    %28 = tpu.transpose %27, [1, 0] : vector<8x128xf32> -> vector<128x8xf32>
    %cst_19 = arith.constant dense<0.000000e+00> : vector<128x256xf32>
    %29 = tpu.matmul %28, %20, %cst_19 {dimension_numbers = #tpu.dot_dimension_numbers<[1], [0], [0], [1], [0, 0, 1, 1], [], []>} : vector<128x8xf32>, vector<8x256xf32>, vector<128x256xf32> -> vector<128x256xf32>
    %cst_20 = arith.constant dense<0xFF800000> : vector<128xf32>
    %30 = vector.multi_reduction <maximumf>, %29, %cst_20 [1] : vector<128x256xf32> to vector<128xf32>
    %31 = vector.shape_cast %30 : vector<128xf32> to vector<128x1xf32>
    %32 = vector.broadcast %31 : vector<128x1xf32> to vector<128x256xf32>
    %33 = arith.subf %29, %32 : vector<128x256xf32>
    %34 = math.exp %33 : vector<128x256xf32>
    %35 = arith.truncf %21 : vector<9x256xf32> to vector<9x256xbf16>
    %36 = arith.truncf %34 : vector<128x256xf32> to vector<128x256xbf16>
    %cst_21 = arith.constant dense<0.000000e+00> : vector<9x128xf32>
    %37 = tpu.matmul %35, %36, %cst_21 {dimension_numbers = #tpu.dot_dimension_numbers<[1], [1], [0], [0], [0, 0, 1, 0], [], []>} : vector<9x256xbf16>, vector<128x256xbf16>, vector<9x128xf32> -> vector<9x128xf32>
    %38 = vector.extract_strided_slice %37 {offsets = [0, 0], sizes = [8, 128], strides = [1, 1]} : vector<9x128xf32> to vector<8x128xf32>
    %39 = vector.extract_strided_slice %37 {offsets = [8, 0], sizes = [1, 128], strides = [1, 1]} : vector<9x128xf32> to vector<1x128xf32>
    %40 = tpu.reciprocal %39 {approx = true} : vector<1x128xf32> -> vector<1x128xf32>
    %41 = vector.broadcast %40 : vector<1x128xf32> to vector<8x128xf32>
    %42 = arith.mulf %38, %41 : vector<8x128xf32>
    %cst_22 = arith.constant dense<0xFF800000> : vector<1xf32>
    %43 = vector.multi_reduction <maximumf>, %23, %cst_22 [1] : vector<1x256xf32> to vector<1xf32>
    %44 = vector.shape_cast %43 : vector<1xf32> to vector<1x1xf32>
    %45 = vector.broadcast %44 : vector<1x1xf32> to vector<1x256xf32>
    %46 = arith.subf %23, %45 : vector<1x256xf32>
    %47 = math.exp %46 : vector<1x256xf32>
    %cst_23 = arith.constant dense<0.000000e+00> : vector<8x1xf32>
    %48 = tpu.matmul %22, %47, %cst_23 {dimension_numbers = #tpu.dot_dimension_numbers<[1], [1], [0], [0], [0, 0, 1, 0], [], []>} : vector<8x256xf32>, vector<1x256xf32>, vector<8x1xf32> -> vector<8x1xf32>
    %cst_24 = arith.constant dense<0.000000e+00> : vector<1xf32>
    %49 = vector.multi_reduction <add>, %47, %cst_24 [1] : vector<1x256xf32> to vector<1xf32>
    %50 = vector.shape_cast %49 : vector<1xf32> to vector<1x1xf32>
    %51 = tpu.reciprocal %50 {approx = true} : vector<1x1xf32> -> vector<1x1xf32>
    %52 = vector.broadcast %51 : vector<1x1xf32> to vector<8x1xf32>
    %53 = arith.mulf %48, %52 : vector<8x1xf32>
    %c0_25 = arith.constant 0 : index
    %c0_26 = arith.constant 0 : index
    %54 = vector.load %arg7[%c0_25, %c0_26] : memref<16x8xf32, #tpu.memory_space<vmem>>, vector<16x8xf32>
    %cst_27 = arith.constant dense<0.000000e+00> : vector<16x128xf32>
    %55 = tpu.matmul %54, %42, %cst_27 {dimension_numbers = #tpu.dot_dimension_numbers<[1], [0], [0], [1], [0, 0, 1, 1], [], []>} : vector<16x8xf32>, vector<8x128xf32>, vector<16x128xf32> -> vector<16x128xf32>
    %c0_28 = arith.constant 0 : index
    %c0_29 = arith.constant 0 : index
    %56 = vector.load %arg8[%c0_28, %c0_29] : memref<16x8xf32, #tpu.memory_space<vmem>>, vector<16x8xf32>
    %cst_30 = arith.constant dense<0.000000e+00> : vector<16x1xf32>
    %57 = tpu.matmul %56, %53, %cst_30 {dimension_numbers = #tpu.dot_dimension_numbers<[1], [0], [0], [1], [0, 0, 1, 1], [], []>} : vector<16x8xf32>, vector<8x1xf32>, vector<16x1xf32> -> vector<16x1xf32>
    %58 = vector.broadcast %57 : vector<16x1xf32> to vector<16x128xf32>
    %59 = arith.addf %55, %58 : vector<16x128xf32>
    %60 = arith.addf %59, %3 : vector<16x128xf32>
    %c0_31 = arith.constant 0 : index
    %c0_32 = arith.constant 0 : index
    %c0_33 = arith.constant 0 : index
    %61 = vector.load %arg9[%c0_31, %c0_32, %c0_33] : memref<1x16x128xf32, #tpu.memory_space<vmem>>, vector<1x16x128xf32>
    %62 = vector.shape_cast %61 : vector<1x16x128xf32> to vector<16x128xf32>
    %63 = vector.shape_cast %60 : vector<16x128xf32> to vector<1x16x128xf32>
    tpu.vector_store %arg9[%c0_31, %c0_32, %c0_33], %63 {strides = array<i32>} : memref<1x16x128xf32, #tpu.memory_space<vmem>>, vector<1x16x128xf32>,
    return
  }
  func.func @transform_0(%arg0: i32, %arg1: i32) -> (i32, i32, i32) {
    %c0_i32 = arith.constant 0 : i32
    %c0_i32_0 = arith.constant 0 : i32
    %c0_i32_1 = arith.constant 0 : i32
    return %arg0, %c0_i32, %c0_i32_0 : i32, i32, i32
  }
  func.func @transform_1(%arg0: i32, %arg1: i32) -> (i32, i32, i32) {
    %c0_i32 = arith.constant 0 : i32
    %c0_i32_0 = arith.constant 0 : i32
    return %arg0, %c0_i32, %arg1 : i32, i32, i32
  }
  func.func @transform_2(%arg0: i32, %arg1: i32) -> (i32, i32) {
    %c0_i32 = arith.constant 0 : i32
    %c0_i32_0 = arith.constant 0 : i32
    %c0_i32_1 = arith.constant 0 : i32
    return %c0_i32, %c0_i32_0 : i32, i32
  }
  func.func @transform_3(%arg0: i32, %arg1: i32) -> (i32, i32) {
    %c0_i32 = arith.constant 0 : i32
    %c0_i32_0 = arith.constant 0 : i32
    %c0_i32_1 = arith.constant 0 : i32
    return %c0_i32, %c0_i32_0 : i32, i32
  }
  func.func @transform_4(%arg0: i32, %arg1: i32) -> (i32, i32) {
    %c0_i32 = arith.constant 0 : i32
    %c0_i32_0 = arith.constant 0 : i32
    %c0_i32_1 = arith.constant 0 : i32
    return %c0_i32, %c0_i32_0 : i32, i32
  }
  func.func @transform_5(%arg0: i32, %arg1: i32) -> (i32, i32) {
    %c0_i32 = arith.constant 0 : i32
    %c0_i32_0 = arith.constant 0 : i32
    %c0_i32_1 = arith.constant 0 : i32
    return %c0_i32, %c0_i32_0 : i32, i32
  }
  func.func @transform_6(%arg0: i32, %arg1: i32) -> (i32, i32) {
    %c0_i32 = arith.constant 0 : i32
    %c0_i32_0 = arith.constant 0 : i32
    %c0_i32_1 = arith.constant 0 : i32
    return %c0_i32, %c0_i32_0 : i32, i32
  }
  func.func @transform_7(%arg0: i32, %arg1: i32) -> (i32, i32, i32) {
    %c0_i32 = arith.constant 0 : i32
    %c0_i32_0 = arith.constant 0 : i32
    return %arg0, %c0_i32, %arg1 : i32, i32, i32
  }
}

</mosaic_0001>

<llo_original>
// kernel: tpu_custom_call.1
$region0: #{tpu_custom_call.1}
  #allocation0 [shape = 'u32[]', space=smem, size = 0x4, offset = 0x4, fixed_abs, tag = 'smem constant byte address 0x4 - core index']
  #allocation1 [shape = 'u32[144,128]{1,0:T(1,128)}', space=vmem, size = 0x12000, scoped, tag = 'internal scratch']
  %s0 = inlined_call_operand.vmem [shape: f32[2,16,256], index: 0, kind: input, shape index: {}]
  %s1 = inlined_call_operand.hbm [shape: f32[2,16,256], index: 1, kind: input, shape index: {}]
  %s2 = inlined_call_operand.vmem [shape: f32[8,16], index: 2, kind: input, shape index: {}]
  %s3 = inlined_call_operand.vmem [shape: f32[24,16], index: 3, kind: input, shape index: {}]
  %s4 = inlined_call_operand.vmem [shape: f32[24,1], index: 4, kind: input, shape index: {}]
  %s5 = inlined_call_operand.vmem [shape: f32[16,8], index: 5, kind: input, shape index: {}]
  %s6 = inlined_call_operand.vmem [shape: f32[16,8], index: 6, kind: input, shape index: {}]
  %s7 = inlined_call_operand.hbm [shape: f32[2,16,256], index: 7, kind: output, shape index: {}]
  %s8 = sld [smem:[#allocation0]]
  $region65: #{tpu_custom_call.1} parent=0
    _
  %s10 = ssub.s32 1, %s8
  %s11 = scalar_select 0, %s10, %s8
  $region1: #{tpu_custom_call.1} parent=0
    #allocation2 [shape = 'u8[16384]{0}', space=vmem, size = 0x4000, scoped, tag = 'input window, operand 1']
    #allocation3 [shape = 's32[2]{0}', space=sflag, size = 0x8, scoped, tag = 'scoped memory for tpu_custom_call.1']
    #allocation4 [shape = 's32[2]{0}', space=sflag, size = 0x8, scoped, tag = 'scoped memory for tpu_custom_call.1']
    #allocation5 [shape = 'u8[16384]{0}', space=vmem, size = 0x4000, scoped, tag = 'output window, operand 0']
    %12 = vsyncpa [#allocation3], 0
    %s13 = scalar_lea.sflag [#allocation3], 1
    %14 = vsyncpa %s13, 0
    %15 = vsyncpa [#allocation4], 0
    %s16 = scalar_lea.sflag [#allocation4], 1
    %17 = vsyncpa %s16, 0
    loop: start=0, step=1, limit=6
    $region2: #{tpu_custom_call.1} parent=1 // loop_pre_header
      _
    $region3: #{tpu_custom_call.1} parent=1 // loop_header
      %s19 = sphi 0, %s23
      %p20 = scmp.ge.s32.totalorder %s19, 6
      %s26 = sphi 0, %s38
      %s27 = sphi 0, %s34
      %s28 = sphi 0, %s26
      %s29 = sphi 0, %s27
      %s30 = sphi 0, %s28
      %s31 = sphi 0, %s29
      %s41 = sphi 0, %s43
      %s44 = sphi 0, %s41
      %s45 = sphi 0, %s44
      %s61 = sphi 0, %s45
      %s69 = sphi 0, %s71
      %s72 = sphi 0, %s69
      %s73 = sphi 0, %s72
      %s89 = sphi 0, %s73
      %s93 = sphi 0, %s93
      %s95 = sphi 0, %s93
      %s96 = sphi 0, %s95
      %s110 = sphi 0, %s96
      %s114 = sphi 0, %s114
      %s116 = sphi 0, %s114
      %s117 = sphi 0, %s116
      %s131 = sphi 0, %s117
      %s135 = sphi 0, %s135
      %s137 = sphi 0, %s135
      %s138 = sphi 0, %s137
      %s152 = sphi 0, %s138
      %s156 = sphi 0, %s156
      %s158 = sphi 0, %s156
      %s159 = sphi 0, %s158
      %s173 = sphi 0, %s159
      %s177 = sphi 0, %s177
      %s179 = sphi 0, %s177
      %s180 = sphi 0, %s179
      %s194 = sphi 0, %s180
      %s202 = sphi 0, %s204
      %s205 = sphi 0, %s202
      %s206 = sphi 0, %s205
      %s222 = sphi 0, %s206
    $region4: #{tpu_custom_call.1} parent=1 // loop_header_branch
      %22 = sbr.rel (%p20) target = $region8
    $region5: #{tpu_custom_call.1} parent=1 // loop_body
      %s24 = ssub.s32 %s19, 1
      %s25 = ssub.s32 %s19, 2
      %s32 = sadd.s32 1, %s27
      %p33 = scmp.ge.s32.totalorder %s32, 2
      %s34 = scalar_select %p33, 0, %s32
      %s35 = sadd.s32 1, %s26
      %s36 = scalar_select %p33, %s35, %s26
      %p37 = scmp.ge.s32.totalorder %s36, 2
      %s38 = scalar_select %p37, 0, %s36
      %s39 = ssub.s32 %s26, %s38
      %p40 = scmp.eq.s32.totalorder %s39, 0
      %s42 = sadd.s32 %s41, 1
      %s43 = scalar_select %p40, %s41, %s42
      %p46 = pneg %p40
      %p47 = scmp.eq.s32.totalorder %s19, 3
      %p48 = por %p46, %p47
      %p49 = scmp.ne.s32.totalorder %s41, %s44
      %p50 = scmp.eq.s32.totalorder %s19, 0
      %p51 = por %p49, %p50
      %p52 = scmp.ne.s32.totalorder %s41, %s44
      %p53 = scmp.eq.s32.totalorder %s24, 3
      %p54 = por %p52, %p53
      %p55 = scmp.ne.s32.totalorder %s44, %s45
      %p56 = scmp.eq.s32.totalorder %s24, 0
      %p57 = por %p55, %p56
      %p58 = scmp.ne.s32.totalorder %s44, %s45
      %p59 = scmp.eq.s32.totalorder %s25, 3
      %p60 = por %p58, %p59
      %p62 = scmp.ne.s32.totalorder %s45, %s61
      %p63 = scmp.eq.s32.totalorder %s25, 0
      %p64 = por %p62, %p63
      %s65 = ssub.s32 %s26, %s38
      %s66 = ssub.s32 %s27, %s34
      %s67 = sor.u32 %s65, %s66
      %p68 = scmp.eq.s32.totalorder %s67, 0
      %s70 = sadd.s32 %s69, 1
      %s71 = scalar_select %p68, %s69, %s70
      %p74 = pneg %p68
      %p75 = scmp.eq.s32.totalorder %s19, 3
      %p76 = por %p74, %p75
      %p77 = scmp.ne.s32.totalorder %s69, %s72
      %p78 = scmp.eq.s32.totalorder %s19, 0
      %p79 = por %p77, %p78
      %p80 = scmp.ne.s32.totalorder %s69, %s72
      %p81 = scmp.eq.s32.totalorder %s24, 3
      %p82 = por %p80, %p81
      %p83 = scmp.ne.s32.totalorder %s72, %s73
      %p84 = scmp.eq.s32.totalorder %s24, 0
      %p85 = por %p83, %p84
      %p86 = scmp.ne.s32.totalorder %s72, %s73
      %p87 = scmp.eq.s32.totalorder %s25, 3
      %p88 = por %p86, %p87
      %p90 = scmp.ne.s32.totalorder %s73, %s89
      %p91 = scmp.eq.s32.totalorder %s25, 0
      %p92 = por %p90, %p91
      %s94 = sadd.s32 %s93, 1
      %p97 = scmp.eq.s32.totalorder %s19, 3
      %p98 = scmp.ne.s32.totalorder %s93, %s95
      %p99 = scmp.eq.s32.totalorder %s19, 0
      %p100 = por %p98, %p99
      %p101 = scmp.ne.s32.totalorder %s93, %s95
      %p102 = scmp.eq.s32.totalorder %s24, 3
      %p103 = por %p101, %p102
      %p104 = scmp.ne.s32.totalorder %s95, %s96
      %p105 = scmp.eq.s32.totalorder %s24, 0
      %p106 = por %p104, %p105
      %p107 = scmp.ne.s32.totalorder %s95, %s96
      %p108 = scmp.eq.s32.totalorder %s25, 3
      %p109 = por %p107, %p108
      %p111 = scmp.ne.s32.totalorder %s96, %s110
      %p112 = scmp.eq.s32.totalorder %s25, 0
      %p113 = por %p111, %p112
      %s115 = sadd.s32 %s114, 1
      %p118 = scmp.eq.s32.totalorder %s19, 3
      %p119 = scmp.ne.s32.totalorder %s114, %s116
      %p120 = scmp.eq.s32.totalorder %s19, 0
      %p121 = por %p119, %p120
      %p122 = scmp.ne.s32.totalorder %s114, %s116
      %p123 = scmp.eq.s32.totalorder %s24, 3
      %p124 = por %p122, %p123
      %p125 = scmp.ne.s32.totalorder %s116, %s117
      %p126 = scmp.eq.s32.totalorder %s24, 0
      %p127 = por %p125, %p126
      %p128 = scmp.ne.s32.totalorder %s116, %s117
      %p129 = scmp.eq.s32.totalorder %s25, 3
      %p130 = por %p128, %p129
      %p132 = scmp.ne.s32.totalorder %s117, %s131
      %p133 = scmp.eq.s32.totalorder %s25, 0
      %p134 = por %p132, %p133
      %s136 = sadd.s32 %s135, 1
      %p139 = scmp.eq.s32.totalorder %s19, 3
      %p140 = scmp.ne.s32.totalorder %s135, %s137
      %p141 = scmp.eq.s32.totalorder %s19, 0
      %p142 = por %p140, %p141
      %p143 = scmp.ne.s32.totalorder %s135, %s137
      %p144 = scmp.eq.s32.totalorder %s24, 3
      %p145 = por %p143, %p144
      %p146 = scmp.ne.s32.totalorder %s137, %s138
      %p147 = scmp.eq.s32.totalorder %s24, 0
      %p148 = por %p146, %p147
      %p149 = scmp.ne.s32.totalorder %s137, %s138
      %p150 = scmp.eq.s32.totalorder %s25, 3
      %p151 = por %p149, %p150
      %p153 = scmp.ne.s32.totalorder %s138, %s152
      %p154 = scmp.eq.s32.totalorder %s25, 0
      %p155 = por %p153, %p154
      %s157 = sadd.s32 %s156, 1
      %p160 = scmp.eq.s32.totalorder %s19, 3
      %p161 = scmp.ne.s32.totalorder %s156, %s158
      %p162 = scmp.eq.s32.totalorder %s19, 0
      %p163 = por %p161, %p162
      %p164 = scmp.ne.s32.totalorder %s156, %s158
      %p165 = scmp.eq.s32.totalorder %s24, 3
      %p166 = por %p164, %p165
      %p167 = scmp.ne.s32.totalorder %s158, %s159
      %p168 = scmp.eq.s32.totalorder %s24, 0
      %p169 = por %p167, %p168
      %p170 = scmp.ne.s32.totalorder %s158, %s159
      %p171 = scmp.eq.s32.totalorder %s25, 3
      %p172 = por %p170, %p171
      %p174 = scmp.ne.s32.totalorder %s159, %s173
      %p175 = scmp.eq.s32.totalorder %s25, 0
      %p176 = por %p174, %p175
      %s178 = sadd.s32 %s177, 1
      %p181 = scmp.eq.s32.totalorder %s19, 3
      %p182 = scmp.ne.s32.totalorder %s177, %s179
      %p183 = scmp.eq.s32.totalorder %s19, 0
      %p184 = por %p182, %p183
      %p185 = scmp.ne.s32.totalorder %s177, %s179
      %p186 = scmp.eq.s32.totalorder %s24, 3
      %p187 = por %p185, %p186
      %p188 = scmp.ne.s32.totalorder %s179, %s180
      %p189 = scmp.eq.s32.totalorder %s24, 0
      %p190 = por %p188, %p189
      %p191 = scmp.ne.s32.totalorder %s179, %s180
      %p192 = scmp.eq.s32.totalorder %s25, 3
      %p193 = por %p191, %p192
      %p195 = scmp.ne.s32.totalorder %s180, %s194
      %p196 = scmp.eq.s32.totalorder %s25, 0
      %p197 = por %p195, %p196
      %s198 = ssub.s32 %s26, %s38
      %s199 = ssub.s32 %s27, %s34
      %s200 = sor.u32 %s198, %s199
      %p201 = scmp.eq.s32.totalorder %s200, 0
      %s203 = sadd.s32 %s202, 1
      %s204 = scalar_select %p201, %s202, %s203
      %p207 = pneg %p201
      %p208 = scmp.eq.s32.totalorder %s19, 3
      %p209 = por %p207, %p208
      %p210 = scmp.ne.s32.totalorder %s202, %s205
      %p211 = scmp.eq.s32.totalorder %s19, 0
      %p212 = por %p210, %p211
      %p213 = scmp.ne.s32.totalorder %s202, %s205
      %p214 = scmp.eq.s32.totalorder %s24, 3
      %p215 = por %p213, %p214
      %p216 = scmp.ne.s32.totalorder %s205, %s206
      %p217 = scmp.eq.s32.totalorder %s24, 0
      %p218 = por %p216, %p217
      %p219 = scmp.ne.s32.totalorder %s205, %s206
      %p220 = scmp.eq.s32.totalorder %s25, 3
      %p221 = por %p219, %p220
      %p223 = scmp.ne.s32.totalorder %s206, %s222
      %p224 = scmp.eq.s32.totalorder %s25, 0
      %p225 = por %p223, %p224
      %p226 = scmp.le.s32.totalorder 1, %s19
      %p227 = scmp.lt.s32.totalorder %s19, 5
      %p228 = pnand %p226, %p227
      %p229 = pneg %p228
      // Predicated region
      $region9: #{tpu_custom_call.1} parent=5 // pred_check
        _
      $region10: #{tpu_custom_call.1} parent=5 // pred_check_branch
        %231 = sbr.rel (%p228) target = $region12
      $region11: #{tpu_custom_call.1} parent=5 // pred_region
        %s232 = ssub.s32 %s19, 1
        // Predicated region
        $region13: #{tpu_custom_call.1} parent=11 // pred_check
          %p233 = pneg %p106
        $region14: #{tpu_custom_call.1} parent=11 // pred_check_branch
          %235 = sbr.rel (%p233) target = $region16
        $region15: #{tpu_custom_call.1} parent=11 // pred_region
          _
        $region16: #{tpu_custom_call.1} parent=11 // pred_fallthru
          _
        // Predicated region
        $region17: #{tpu_custom_call.1} parent=11 // pred_check
          %p236 = pneg %p127
        $region18: #{tpu_custom_call.1} parent=11 // pred_check_branch
          %238 = sbr.rel (%p236) target = $region20
        $region19: #{tpu_custom_call.1} parent=11 // pred_region
          _
        $region20: #{tpu_custom_call.1} parent=11 // pred_fallthru
          _
        // Predicated region
        $region21: #{tpu_custom_call.1} parent=11 // pred_check
          %p239 = pneg %p148
        $region22: #{tpu_custom_call.1} parent=11 // pred_check_branch
          %241 = sbr.rel (%p239) target = $region24
        $region23: #{tpu_custom_call.1} parent=11 // pred_region
          _
        $region24: #{tpu_custom_call.1} parent=11 // pred_fallthru
          _
        // Predicated region
        $region25: #{tpu_custom_call.1} parent=11 // pred_check
          %p242 = pneg %p169
        $region26: #{tpu_custom_call.1} parent=11 // pred_check_branch
          %244 = sbr.rel (%p242) target = $region28
        $region27: #{tpu_custom_call.1} parent=11 // pred_region
          _
        $region28: #{tpu_custom_call.1} parent=11 // pred_fallthru
          _
        // Predicated region
        $region29: #{tpu_custom_call.1} parent=11 // pred_check
          %p245 = pneg %p190
        $region30: #{tpu_custom_call.1} parent=11 // pred_check_branch
          %247 = sbr.rel (%p245) target = $region32
        $region31: #{tpu_custom_call.1} parent=11 // pred_region
          _
        $region32: #{tpu_custom_call.1} parent=11 // pred_fallthru
          _
      $region12: #{tpu_custom_call.1} parent=5 // pred_fallthru
        _
      %p248 = scmp.lt.s32.totalorder %s19, 4
      // Predicated region
      $region33: #{tpu_custom_call.1} parent=5 // pred_check
        %p249 = pneg %p248
      $region34: #{tpu_custom_call.1} parent=5 // pred_check_branch
        %251 = sbr.rel (%p249) target = $region36
      $region35: #{tpu_custom_call.1} parent=5 // pred_region
        // Predicated region
        $region37: #{tpu_custom_call.1} parent=35 // pred_check
          %p252 = pneg %p51
        $region38: #{tpu_custom_call.1} parent=35 // pred_check_branch
          %254 = sbr.rel (%p252) target = $region40
        $region39: #{tpu_custom_call.1} parent=35 // pred_region
          %p255 = scmp.lt.s32.totalorder %s26, 1
          %s256 = scalar_select %p255, %s26, 1
          %s257 = smul.addr %s256, 4
          %s258 = smul.addr %s257, 8
          %s259 = scalar_lea.vmem %s0, %s258
        $region40: #{tpu_custom_call.1} parent=35 // pred_fallthru
          _
        // Predicated region
        $region41: #{tpu_custom_call.1} parent=35 // pred_check
          %p260 = pneg %p79
        $region42: #{tpu_custom_call.1} parent=35 // pred_check_branch
          %262 = sbr.rel (%p260) target = $region44
        $region43: #{tpu_custom_call.1} parent=35 // pred_region
          %s263 = sand.u32 %s69, 1
          %s264 = scalar_lea.sflag [#allocation3], %s263
          %s265 = sand.u32 %s69, 1
          %s266 = smul.addr %s265, 16
          %s267 = scalar_lea.vmem [#allocation2], %s266
          %s269 = ssub.s32 256, 256
          %270 = vsyncadd %s264, %s269
          %s271 = smul.addr %s26, 4
          %s272 = sadd.s32 %s27, %s271
          %s273 = smul.addr %s272, 128
          %s274 = scalar_lea.hbm %s1, %s273
          %s275 = sshll.u32 %s267, 4
          %s276 = int_to_ptr.vmem [resolvable:$true] %s275
          %281 = dma.hbm_to_vmem [thread:$0]  %s274, 256, %s276, %s264, 256, 128, 8
        $region44: #{tpu_custom_call.1} parent=35 // pred_fallthru
          _
      $region36: #{tpu_custom_call.1} parent=5 // pred_fallthru
        _
      %p282 = scmp.le.s32.totalorder 1, %s19
      %p283 = scmp.lt.s32.totalorder %s19, 5
      %p284 = pnand %p282, %p283
      %p285 = pneg %p284
      // Predicated region
      $region45: #{tpu_custom_call.1} parent=5 // pred_check
        _
      $region46: #{tpu_custom_call.1} parent=5 // pred_check_branch
        %287 = sbr.rel (%p284) target = $region48
      $region47: #{tpu_custom_call.1} parent=5 // pred_region
        %s288 = ssub.s32 %s19, 1
        %s289 = sand.u32 %s72, 1
        %s290 = scalar_lea.sflag [#allocation3], %s289
        %s291 = sand.u32 %s72, 1
        %s292 = smul.addr %s291, 16
        %s293 = scalar_lea.vmem [#allocation2], %s292
        // Predicated region
        $region49: #{tpu_custom_call.1} parent=47 // pred_check
          %p294 = pneg %p85
        $region50: #{tpu_custom_call.1} parent=47 // pred_check_branch
          %296 = sbr.rel (%p294) target = $region52
        $region51: #{tpu_custom_call.1} parent=47 // pred_region
          %297 = dma.done %s290, 256
        $region52: #{tpu_custom_call.1} parent=47 // pred_fallthru
          _
        %p298 = scmp.lt.s32.totalorder %s28, 1
        %s299 = scalar_select %p298, %s28, 1
        %s300 = smul.addr %s299, 4
        %s301 = smul.addr %s300, 8
        %s302 = scalar_lea.vmem %s0, %s301
        %p303 = pneg %p57
        %p304 = pneg %p54
        %s305 = sand.u32 %s72, 1
        %s306 = scalar_lea.sflag [#allocation3], %s305
        %s307 = sand.u32 %s72, 1
        %s308 = smul.addr %s307, 16
        %s309 = scalar_lea.vmem [#allocation2], %s308
        %p310 = pneg %p85
        %p311 = pneg %p82
        %p312 = pneg %p106
        %p313 = pneg %p103
        %p314 = pneg %p127
        %p315 = pneg %p124
        %p316 = pneg %p148
        %p317 = pneg %p145
        %p318 = pneg %p169
        %p319 = pneg %p166
        %p320 = pneg %p190
        %p321 = pneg %p187
        %p322 = pneg %p218
        %p323 = pneg %p215
        %s324 = sand.u32 %s205, 1
        %s325 = scalar_lea.sflag [#allocation4], %s324
        %s326 = sand.u32 %s205, 1
        %s327 = smul.addr %s326, 16
        %s328 = scalar_lea.vmem [#allocation5], %s327
        %p329 = scmp.lt.s32.totalorder %s28, 1
        %s330 = scalar_select %p329, %s28, 1
        %s331 = smul.addr %s330, 4
        %s332 = smul.addr %s331, 8
        %s333 = scalar_lea.vmem %s0, %s332
        %v335 = vld [vmem:[%s333] sm:$0xff]
        %v336 = vld [vmem:[%s333 + $0x8] sm:$0xff]
        %v337 = vld [vmem:[%s333 + $0x10] sm:$0xff]
        %v338 = vld [vmem:[%s333 + $0x18] sm:$0xff]
        %v339 = vld [vmem:[%s293] sm:$0xff]
        %v340 = vld [vmem:[%s293 + $0x8] sm:$0xff]
        %v341 = vadd.f32 %v335, %v336
        %342 = vadd.xlane.f32.xlu0 %v341
        %v343 = vpop.xlane.xlu0 %342
        %v344 = vadd.f32 %v337, %v338
        %345 = vadd.xlane.f32.xlu0 %v344
        %v346 = vpop.xlane.xlu0 %345
        %v347 = vrcp.pop 256.0
        %v348 = vmul.f32 %v343, %v347
        %v349 = vmul.f32 %v346, %v347
        %v350 = vld [vmem:[%s3] sm:$0xff]
        %v351 = vld [vmem:[%s3 + $0x8] sm:$0xff]
        %v352 = vld [vmem:[%s3 + $0x10] sm:$0xff]
        %v353 = vld [vmem:[%s4] sm:$0xff]
        %v354 = vld [vmem:[%s4 + $0x8] sm:$0xff]
        %v355 = vld [vmem:[%s4 + $0x10] sm:$0xff]
        %357 = vset.pattern.permute.xlu0 0
        %358 = vperm.xlu0 %357, %v353
        %v359 = vpop.permute.xlu0 %358
        %362 = vset.pattern.permute.xlu0 0
        %363 = vperm.xlu0 %362, %v354
        %v364 = vpop.permute.xlu0 %363
        %367 = vset.pattern.permute.xlu0 0
        %368 = vperm.xlu0 %367, %v355
        %v369 = vpop.permute.xlu0 %368
        %vm371 = vcmask 130048
        %v373 = vsel %vm371, %v350, 0
        %v376 = vsel %vm371, %v351, 0
        %v379 = vsel %vm371, %v352, 0
        %381 = vmatprep.subr.mxu0 %v336
        %382 = vmatpush1.msra.mxu0 %v335
        %383 = vmatprep.subr.mxu0 %v338
        %384 = vmatpush1.msra.mxu0 %v337
        %385 = vmatprep.subr.mxu0 0.0
        %386 = vmatpush1.msra.mxu0 0.0
        %387 = vmatprep.subr.mxu0 0.0
        %388 = vmatpush1.msra.mxu0 0.0
        %389 = vmatprep.subr.mxu0 0.0
        %390 = vmatpush1.msra.mxu0 0.0
        %391 = vmatprep.subr.mxu0 0.0
        %392 = vmatpush1.msra.mxu0 0.0
        %393 = vmatprep.subr.mxu0 0.0
        %394 = vmatpush1.msra.mxu0 0.0
        %395 = vmatprep.subr.mxu0 0.0
        %396 = vmatpush1.msra.mxu0 0.0
        %397 = vmatprep.subr.mxu0 0.0
        %398 = vmatpush1.msra.mxu0 0.0
        %399 = vmatprep.subr.mxu0 0.0
        %400 = vmatpush1.msra.mxu0 0.0
        %401 = vmatprep.subr.mxu0 0.0
        %402 = vmatpush1.msra.mxu0 0.0
        %403 = vmatprep.subr.mxu0 0.0
        %404 = vmatpush1.msra.mxu0 0.0
        %405 = vmatprep.subr.mxu0 0.0
        %406 = vmatpush1.msra.mxu0 0.0
        %407 = vmatprep.subr.mxu0 0.0
        %408 = vmatpush1.msra.mxu0 0.0
        %409 = vmatprep.subr.mxu0 0.0
        %410 = vmatpush1.msra.mxu0 0.0
        %411 = vmatprep.subr.mxu0 0.0
        %412 = vmatpush1.msra.mxu0 0.0
        %413 = vmatprep.subr.mxu0 0.0
        %414 = vmatpush1.msra.mxu0 0.0
        %415 = vmatprep.subr.mxu0 0.0
        %416 = vmatpush1.msra.mxu0 0.0
        %417 = vmatprep.subr.mxu0 0.0
        %418 = vmatpush1.msra.mxu0 0.0
        %419 = vmatprep.subr.mxu0 0.0
        %420 = vmatpush1.msra.mxu0 0.0
        %421 = vmatprep.subr.mxu0 0.0
        %422 = vmatpush1.msra.mxu0 0.0
        %423 = vmatprep.subr.mxu0 0.0
        %424 = vmatpush1.msra.mxu0 0.0
        %425 = vmatprep.subr.mxu0 0.0
        %426 = vmatpush1.msra.mxu0 0.0
        %427 = vmatprep.subr.mxu0 0.0
        %428 = vmatpush1.msra.mxu0 0.0
        %429 = vmatprep.subr.mxu0 0.0
        %430 = vmatpush1.msra.mxu0 0.0
        %431 = vmatprep.subr.mxu0 0.0
        %432 = vmatpush1.msra.mxu0 0.0
        %433 = vmatprep.subr.mxu0 0.0
        %434 = vmatpush1.msra.mxu0 0.0
        %435 = vmatprep.subr.mxu0 0.0
        %436 = vmatpush1.msra.mxu0 0.0
        %437 = vmatprep.subr.mxu0 0.0
        %438 = vmatpush1.msra.mxu0 0.0
        %439 = vmatprep.subr.mxu0 0.0
        %440 = vmatpush1.msra.mxu0 0.0
        %441 = vmatprep.subr.mxu0 0.0
        %442 = vmatpush1.msra.mxu0 0.0
        %443 = vmatprep.subr.mxu0 0.0
        %444 = vmatpush1.msra.mxu0 0.0
        %445 = vmatprep.mubr.f32.mxu0 0.0
        %446 = vmatmul.mubr.f32.gmra.mrb[0].mxu0 %v373
        %v447 = vpop.f32.mrb[0].mxu0
        %v448 = vadd.f32 %v359, %v447
        %v449 = vpop.f32.mrb[0].mxu0
        %v450 = vadd.f32 %v359, %v449
        %451 = vmatprep.mubr.f32.mxu0 0.0
        %452 = vmatmul.mubr.f32.gmra.mrb[0].mxu0 %v376
        %v453 = vpop.f32.mrb[0].mxu0
        %v454 = vadd.f32 %v364, %v453
        %v455 = vpop.f32.mrb[0].mxu0
        %v456 = vadd.f32 %v364, %v455
        %457 = vmatprep.mubr.f32.mxu0 0.0
        %458 = vmatmul.mubr.f32.gmra.mrb[0].mxu0 %v379
        %v459 = vpop.f32.mrb[0].mxu0
        %v460 = vadd.f32 %v369, %v459
        %v461 = vpop.f32.mrb[0].mxu0
        %v462 = vadd.f32 %v369, %v461
        %463 = vdwg.mxu0
        %464 = vmatprep.subr.mxu0 0.0
        %465 = vmatpush1.msra.mxu0 %v348
        %466 = vmatprep.subr.mxu0 0.0
        %467 = vmatpush1.msra.mxu0 %v349
        %468 = vmatprep.subr.mxu0 0.0
        %469 = vmatpush1.msra.mxu0 0.0
        %470 = vmatprep.subr.mxu0 0.0
        %471 = vmatpush1.msra.mxu0 0.0
        %472 = vmatprep.subr.mxu0 0.0
        %473 = vmatpush1.msra.mxu0 0.0
        %474 = vmatprep.subr.mxu0 0.0
        %475 = vmatpush1.msra.mxu0 0.0
        %476 = vmatprep.subr.mxu0 0.0
        %477 = vmatpush1.msra.mxu0 0.0
        %478 = vmatprep.subr.mxu0 0.0
        %479 = vmatpush1.msra.mxu0 0.0
        %480 = vmatprep.subr.mxu0 0.0
        %481 = vmatpush1.msra.mxu0 0.0
        %482 = vmatprep.subr.mxu0 0.0
        %483 = vmatpush1.msra.mxu0 0.0
        %484 = vmatprep.subr.mxu0 0.0
        %485 = vmatpush1.msra.mxu0 0.0
        %486 = vmatprep.subr.mxu0 0.0
        %487 = vmatpush1.msra.mxu0 0.0
        %488 = vmatprep.subr.mxu0 0.0
        %489 = vmatpush1.msra.mxu0 0.0
        %490 = vmatprep.subr.mxu0 0.0
        %491 = vmatpush1.msra.mxu0 0.0
        %492 = vmatprep.subr.mxu0 0.0
        %493 = vmatpush1.msra.mxu0 0.0
        %494 = vmatprep.subr.mxu0 0.0
        %495 = vmatpush1.msra.mxu0 0.0
        %496 = vmatprep.subr.mxu0 0.0
        %497 = vmatpush1.msra.mxu0 0.0
        %498 = vmatprep.subr.mxu0 0.0
        %499 = vmatpush1.msra.mxu0 0.0
        %500 = vmatprep.subr.mxu0 0.0
        %501 = vmatpush1.msra.mxu0 0.0
        %502 = vmatprep.subr.mxu0 0.0
        %503 = vmatpush1.msra.mxu0 0.0
        %504 = vmatprep.subr.mxu0 0.0
        %505 = vmatpush1.msra.mxu0 0.0
        %506 = vmatprep.subr.mxu0 0.0
        %507 = vmatpush1.msra.mxu0 0.0
        %508 = vmatprep.subr.mxu0 0.0
        %509 = vmatpush1.msra.mxu0 0.0
        %510 = vmatprep.subr.mxu0 0.0
        %511 = vmatpush1.msra.mxu0 0.0
        %512 = vmatprep.subr.mxu0 0.0
        %513 = vmatpush1.msra.mxu0 0.0
        %514 = vmatprep.subr.mxu0 0.0
        %515 = vmatpush1.msra.mxu0 0.0
        %516 = vmatprep.subr.mxu0 0.0
        %517 = vmatpush1.msra.mxu0 0.0
        %518 = vmatprep.subr.mxu0 0.0
        %519 = vmatpush1.msra.mxu0 0.0
        %520 = vmatprep.subr.mxu0 0.0
        %521 = vmatpush1.msra.mxu0 0.0
        %522 = vmatprep.subr.mxu0 0.0
        %523 = vmatpush1.msra.mxu0 0.0
        %524 = vmatprep.subr.mxu0 0.0
        %525 = vmatpush1.msra.mxu0 0.0
        %526 = vmatprep.subr.mxu0 0.0
        %527 = vmatpush1.msra.mxu0 0.0
        %528 = vmatprep.mubr.f32.mxu0 0.0
        %529 = vmatmul.mubr.f32.gmra.mrb[0].mxu0 %v373
        %v530 = vpop.f32.mrb[0].mxu0
        %v531 = vadd.f32 %v353, %v530
        %v532 = vpop.f32.mrb[0].mxu0
        %533 = vmatprep.mubr.f32.mxu0 0.0
        %534 = vmatmul.mubr.f32.gmra.mrb[0].mxu0 %v376
        %v535 = vpop.f32.mrb[0].mxu0
        %v536 = vpop.f32.mrb[0].mxu0
        %537 = vmatprep.mubr.f32.mxu0 0.0
        %538 = vmatmul.mubr.f32.gmra.mrb[0].mxu0 %v379
        %v539 = vpop.f32.mrb[0].mxu0
        %v540 = vpop.f32.mrb[0].mxu0
        %541 = vdwg.mxu0
        %543 = vset.pattern.permute.xlu0 0
        %544 = vperm.xlu0 %543, %v531
        %v545 = vpop.permute.xlu0 %544
        %v547 = vsub.f32 %v448, %v545
        %v548 = vsub.f32 %v450, %v545
        %v549 = vld [vmem:[%s2] sm:$0xff]
        %v550 = vsub.f32 %v339, %v348
        %v551 = vsub.f32 %v340, %v349
        %v553 = vsel %vm371, %v549, 0
        %555 = vmatprep.subr.mxu0 0.0
        %556 = vmatpush1.msra.mxu0 %v550
        %557 = vmatprep.subr.mxu0 0.0
        %558 = vmatpush1.msra.mxu0 %v551
        %559 = vmatprep.subr.mxu0 0.0
        %560 = vmatpush1.msra.mxu0 0.0
        %561 = vmatprep.subr.mxu0 0.0
        %562 = vmatpush1.msra.mxu0 0.0
        %563 = vmatprep.subr.mxu0 0.0
        %564 = vmatpush1.msra.mxu0 0.0
        %565 = vmatprep.subr.mxu0 0.0
        %566 = vmatpush1.msra.mxu0 0.0
        %567 = vmatprep.subr.mxu0 0.0
        %568 = vmatpush1.msra.mxu0 0.0
        %569 = vmatprep.subr.mxu0 0.0
        %570 = vmatpush1.msra.mxu0 0.0
        %571 = vmatprep.subr.mxu0 0.0
        %572 = vmatpush1.msra.mxu0 0.0
        %573 = vmatprep.subr.mxu0 0.0
        %574 = vmatpush1.msra.mxu0 0.0
        %575 = vmatprep.subr.mxu0 0.0
        %576 = vmatpush1.msra.mxu0 0.0
        %577 = vmatprep.subr.mxu0 0.0
        %578 = vmatpush1.msra.mxu0 0.0
        %579 = vmatprep.subr.mxu0 0.0
        %580 = vmatpush1.msra.mxu0 0.0
        %581 = vmatprep.subr.mxu0 0.0
        %582 = vmatpush1.msra.mxu0 0.0
        %583 = vmatprep.subr.mxu0 0.0
        %584 = vmatpush1.msra.mxu0 0.0
        %585 = vmatprep.subr.mxu0 0.0
        %586 = vmatpush1.msra.mxu0 0.0
        %587 = vmatprep.subr.mxu0 0.0
        %588 = vmatpush1.msra.mxu0 0.0
        %589 = vmatprep.subr.mxu0 0.0
        %590 = vmatpush1.msra.mxu0 0.0
        %591 = vmatprep.subr.mxu0 0.0
        %592 = vmatpush1.msra.mxu0 0.0
        %593 = vmatprep.subr.mxu0 0.0
        %594 = vmatpush1.msra.mxu0 0.0
        %595 = vmatprep.subr.mxu0 0.0
        %596 = vmatpush1.msra.mxu0 0.0
        %597 = vmatprep.subr.mxu0 0.0
        %598 = vmatpush1.msra.mxu0 0.0
        %599 = vmatprep.subr.mxu0 0.0
        %600 = vmatpush1.msra.mxu0 0.0
        %601 = vmatprep.subr.mxu0 0.0
        %602 = vmatpush1.msra.mxu0 0.0
        %603 = vmatprep.subr.mxu0 0.0
        %604 = vmatpush1.msra.mxu0 0.0
        %605 = vmatprep.subr.mxu0 0.0
        %606 = vmatpush1.msra.mxu0 0.0
        %607 = vmatprep.subr.mxu0 0.0
        %608 = vmatpush1.msra.mxu0 0.0
        %609 = vmatprep.subr.mxu0 0.0
        %610 = vmatpush1.msra.mxu0 0.0
        %611 = vmatprep.subr.mxu0 0.0
        %612 = vmatpush1.msra.mxu0 0.0
        %613 = vmatprep.subr.mxu0 0.0
        %614 = vmatpush1.msra.mxu0 0.0
        %615 = vmatprep.subr.mxu0 0.0
        %616 = vmatpush1.msra.mxu0 0.0
        %617 = vmatprep.subr.mxu0 0.0
        %618 = vmatpush1.msra.mxu0 0.0
        %619 = vmatprep.mubr.f32.mxu0 0.0
        %620 = vmatmul.mubr.f32.gmra.mrb[0].mxu0 %v553
        %v621 = vpop.f32.mrb[0].mxu0
        %v622 = vadd.f32 0.0, %v621
        %v623 = vpop.f32.mrb[0].mxu0
        %624 = vdwg.mxu0
        %625 = vxpose.xlu0.b32.start [1/16] %v622, 128
        %626 = vxpose.xlu0.b32.cont [2/16] 0.0, 128
        %627 = vxpose.xlu0.b32.cont [3/16] 0.0, 128
        %628 = vxpose.xlu0.b32.cont [4/16] 0.0, 128
        %629 = vxpose.xlu0.b32.cont [5/16] 0.0, 128
        %630 = vxpose.xlu0.b32.cont [6/16] 0.0, 128
        %631 = vxpose.xlu0.b32.cont [7/16] 0.0, 128
        %632 = vxpose.xlu0.b32.cont [8/16] 0.0, 128
        %633 = vxpose.xlu0.b32.cont [9/16] 0.0, 128
        %634 = vxpose.xlu0.b32.cont [10/16] 0.0, 128
        %635 = vxpose.xlu0.b32.cont [11/16] 0.0, 128
        %636 = vxpose.xlu0.b32.cont [12/16] 0.0, 128
        %637 = vxpose.xlu0.b32.cont [13/16] 0.0, 128
        %638 = vxpose.xlu0.b32.cont [14/16] 0.0, 128
        %639 = vxpose.xlu0.b32.cont [15/16] 0.0, 128
        %640 = vxpose.xlu0.b32.end [16/16] 0.0, 128
        %v641 = vpop.trf.xlu0
        %v642 = vpop.trf.xlu0
        %v643 = vpop.trf.xlu0
        %v644 = vpop.trf.xlu0
        %v645 = vpop.trf.xlu0
        %v646 = vpop.trf.xlu0
        %v647 = vpop.trf.xlu0
        %v648 = vpop.trf.xlu0
        %v649 = vpop.trf.xlu0
        %v650 = vpop.trf.xlu0
        %v651 = vpop.trf.xlu0
        %v652 = vpop.trf.xlu0
        %v653 = vpop.trf.xlu0
        %v654 = vpop.trf.xlu0
        %v655 = vpop.trf.xlu0
        %v656 = vpop.trf.xlu0
        %vm657 = vcmask 64512
        %v659 = vsel %vm657, %v641, 0
        %v662 = vsel %vm657, %v642, 0
        %v665 = vsel %vm657, %v643, 0
        %v668 = vsel %vm657, %v644, 0
        %v671 = vsel %vm657, %v645, 0
        %v674 = vsel %vm657, %v646, 0
        %v677 = vsel %vm657, %v647, 0
        %v680 = vsel %vm657, %v648, 0
        %v683 = vsel %vm657, %v649, 0
        %v686 = vsel %vm657, %v650, 0
        %v689 = vsel %vm657, %v651, 0
        %v692 = vsel %vm657, %v652, 0
        %v695 = vsel %vm657, %v653, 0
        %v698 = vsel %vm657, %v654, 0
        %v701 = vsel %vm657, %v655, 0
        %v704 = vsel %vm657, %v656, 0
        %706 = vmatprep.subr.mxu0 %v548
        %707 = vmatpush1.msra.mxu0 %v547
        %708 = vmatprep.subr.mxu0 0.0
        %709 = vmatpush1.msra.mxu0 0.0
        %710 = vmatprep.subr.mxu0 0.0
        %711 = vmatpush1.msra.mxu0 0.0
        %712 = vmatprep.subr.mxu0 0.0
        %713 = vmatpush1.msra.mxu0 0.0
        %714 = vmatprep.subr.mxu0 0.0
        %715 = vmatpush1.msra.mxu0 0.0
        %716 = vmatprep.subr.mxu0 0.0
        %717 = vmatpush1.msra.mxu0 0.0
        %718 = vmatprep.subr.mxu0 0.0
        %719 = vmatpush1.msra.mxu0 0.0
        %720 = vmatprep.subr.mxu0 0.0
        %721 = vmatpush1.msra.mxu0 0.0
        %722 = vmatprep.subr.mxu0 0.0
        %723 = vmatpush1.msra.mxu0 0.0
        %724 = vmatprep.subr.mxu0 0.0
        %725 = vmatpush1.msra.mxu0 0.0
        %726 = vmatprep.subr.mxu0 0.0
        %727 = vmatpush1.msra.mxu0 0.0
        %728 = vmatprep.subr.mxu0 0.0
        %729 = vmatpush1.msra.mxu0 0.0
        %730 = vmatprep.subr.mxu0 0.0
        %731 = vmatpush1.msra.mxu0 0.0
        %732 = vmatprep.subr.mxu0 0.0
        %733 = vmatpush1.msra.mxu0 0.0
        %734 = vmatprep.subr.mxu0 0.0
        %735 = vmatpush1.msra.mxu0 0.0
        %736 = vmatprep.subr.mxu0 0.0
        %737 = vmatpush1.msra.mxu0 0.0
        %738 = vmatprep.subr.mxu0 0.0
        %739 = vmatpush1.msra.mxu0 0.0
        %740 = vmatprep.subr.mxu0 0.0
        %741 = vmatpush1.msra.mxu0 0.0
        %742 = vmatprep.subr.mxu0 0.0
        %743 = vmatpush1.msra.mxu0 0.0
        %744 = vmatprep.subr.mxu0 0.0
        %745 = vmatpush1.msra.mxu0 0.0
        %746 = vmatprep.subr.mxu0 0.0
        %747 = vmatpush1.msra.mxu0 0.0
        %748 = vmatprep.subr.mxu0 0.0
        %749 = vmatpush1.msra.mxu0 0.0
        %750 = vmatprep.subr.mxu0 0.0
        %751 = vmatpush1.msra.mxu0 0.0
        %752 = vmatprep.subr.mxu0 0.0
        %753 = vmatpush1.msra.mxu0 0.0
        %754 = vmatprep.subr.mxu0 0.0
        %755 = vmatpush1.msra.mxu0 0.0
        %756 = vmatprep.subr.mxu0 0.0
        %757 = vmatpush1.msra.mxu0 0.0
        %758 = vmatprep.subr.mxu0 0.0
        %759 = vmatpush1.msra.mxu0 0.0
        %760 = vmatprep.subr.mxu0 0.0
        %761 = vmatpush1.msra.mxu0 0.0
        %762 = vmatprep.subr.mxu0 0.0
        %763 = vmatpush1.msra.mxu0 0.0
        %764 = vmatprep.subr.mxu0 0.0
        %765 = vmatpush1.msra.mxu0 0.0
        %766 = vmatprep.subr.mxu0 0.0
        %767 = vmatpush1.msra.mxu0 0.0
        %768 = vmatprep.subr.mxu0 0.0
        %769 = vmatpush1.msra.mxu0 0.0
        %770 = vmatprep.mubr.f32.mxu0 0.0
        %771 = vmatmul.mubr.f32.gmra.mrb[0].mxu0 %v659
        %v772 = vpop.f32.mrb[0].mxu0
        %v773 = vadd.f32 0.0, %v772
        %v774 = vpop.f32.mrb[0].mxu0
        %v775 = vadd.f32 0.0, %v774
        %776 = vmatprep.mubr.f32.mxu0 0.0
        %777 = vmatmul.mubr.f32.gmra.mrb[0].mxu0 %v662
        %v778 = vpop.f32.mrb[0].mxu0
        %v779 = vadd.f32 0.0, %v778
        %v780 = vpop.f32.mrb[0].mxu0
        %v781 = vadd.f32 0.0, %v780
        %782 = vmatprep.mubr.f32.mxu0 0.0
        %783 = vmatmul.mubr.f32.gmra.mrb[0].mxu0 %v665
        %v784 = vpop.f32.mrb[0].mxu0
        %v785 = vadd.f32 0.0, %v784
        %v786 = vpop.f32.mrb[0].mxu0
        %v787 = vadd.f32 0.0, %v786
        %788 = vmatprep.mubr.f32.mxu0 0.0
        %789 = vmatmul.mubr.f32.gmra.mrb[0].mxu0 %v668
        %v790 = vpop.f32.mrb[0].mxu0
        %v791 = vadd.f32 0.0, %v790
        %v792 = vpop.f32.mrb[0].mxu0
        %v793 = vadd.f32 0.0, %v792
        %794 = vmatprep.mubr.f32.mxu0 0.0
        %795 = vmatmul.mubr.f32.gmra.mrb[0].mxu0 %v671
        %v796 = vpop.f32.mrb[0].mxu0
        %v797 = vadd.f32 0.0, %v796
        %v798 = vpop.f32.mrb[0].mxu0
        %v799 = vadd.f32 0.0, %v798
        %800 = vmatprep.mubr.f32.mxu0 0.0
        %801 = vmatmul.mubr.f32.gmra.mrb[0].mxu0 %v674
        %v802 = vpop.f32.mrb[0].mxu0
        %v803 = vadd.f32 0.0, %v802
        %v804 = vpop.f32.mrb[0].mxu0
        %v805 = vadd.f32 0.0, %v804
        %806 = vmatprep.mubr.f32.mxu0 0.0
        %807 = vmatmul.mubr.f32.gmra.mrb[0].mxu0 %v677
        %v808 = vpop.f32.mrb[0].mxu0
        %v809 = vadd.f32 0.0, %v808
        %v810 = vpop.f32.mrb[0].mxu0
        %v811 = vadd.f32 0.0, %v810
        %812 = vmatprep.mubr.f32.mxu0 0.0
        %813 = vmatmul.mubr.f32.gmra.mrb[0].mxu0 %v680
        %v814 = vpop.f32.mrb[0].mxu0
        %v815 = vadd.f32 0.0, %v814
        %v816 = vpop.f32.mrb[0].mxu0
        %v817 = vadd.f32 0.0, %v816
        %818 = vmatprep.mubr.f32.mxu0 0.0
        %819 = vmatmul.mubr.f32.gmra.mrb[0].mxu0 %v683
        %v820 = vpop.f32.mrb[0].mxu0
        %v821 = vadd.f32 0.0, %v820
        %v822 = vpop.f32.mrb[0].mxu0
        %v823 = vadd.f32 0.0, %v822
        %824 = vmatprep.mubr.f32.mxu0 0.0
        %825 = vmatmul.mubr.f32.gmra.mrb[0].mxu0 %v686
        %v826 = vpop.f32.mrb[0].mxu0
        %v827 = vadd.f32 0.0, %v826
        %v828 = vpop.f32.mrb[0].mxu0
        %v829 = vadd.f32 0.0, %v828
        %830 = vmatprep.mubr.f32.mxu0 0.0
        %831 = vmatmul.mubr.f32.gmra.mrb[0].mxu0 %v689
        %v832 = vpop.f32.mrb[0].mxu0
        %v833 = vadd.f32 0.0, %v832
        %v834 = vpop.f32.mrb[0].mxu0
        %v835 = vadd.f32 0.0, %v834
        %836 = vmatprep.mubr.f32.mxu0 0.0
        %837 = vmatmul.mubr.f32.gmra.mrb[0].mxu0 %v692
        %v838 = vpop.f32.mrb[0].mxu0
        %v839 = vadd.f32 0.0, %v838
        %v840 = vpop.f32.mrb[0].mxu0
        %v841 = vadd.f32 0.0, %v840
        %842 = vmatprep.mubr.f32.mxu0 0.0
        %843 = vmatmul.mubr.f32.gmra.mrb[0].mxu0 %v695
        %v844 = vpop.f32.mrb[0].mxu0
        %v845 = vadd.f32 0.0, %v844
        %v846 = vpop.f32.mrb[0].mxu0
        %v847 = vadd.f32 0.0, %v846
        %848 = vmatprep.mubr.f32.mxu0 0.0
        %849 = vmatmul.mubr.f32.gmra.mrb[0].mxu0 %v698
        %v850 = vpop.f32.mrb[0].mxu0
        %v851 = vadd.f32 0.0, %v850
        %v852 = vpop.f32.mrb[0].mxu0
        %v853 = vadd.f32 0.0, %v852
        %854 = vmatprep.mubr.f32.mxu0 0.0
        %855 = vmatmul.mubr.f32.gmra.mrb[0].mxu0 %v701
        %v856 = vpop.f32.mrb[0].mxu0
        %v857 = vadd.f32 0.0, %v856
        %v858 = vpop.f32.mrb[0].mxu0
        %v859 = vadd.f32 0.0, %v858
        %860 = vmatprep.mubr.f32.mxu0 0.0
        %861 = vmatmul.mubr.f32.gmra.mrb[0].mxu0 %v704
        %v862 = vpop.f32.mrb[0].mxu0
        %v863 = vadd.f32 0.0, %v862
        %v864 = vpop.f32.mrb[0].mxu0
        %v865 = vadd.f32 0.0, %v864
        %866 = vdwg.mxu0
        %v867 = vmax.f32 %v773, %v775
        %868 = vmax.xlane.f32.xlu0 %v867
        %v869 = vpop.xlane.xlu0 %868
        %v870 = vmax.f32 %v779, %v781
        %871 = vmax.xlane.f32.xlu0 %v870
        %v872 = vpop.xlane.xlu0 %871
        %v873 = vmax.f32 %v785, %v787
        %874 = vmax.xlane.f32.xlu0 %v873
        %v875 = vpop.xlane.xlu0 %874
        %v876 = vmax.f32 %v791, %v793
        %877 = vmax.xlane.f32.xlu0 %v876
        %v878 = vpop.xlane.xlu0 %877
        %v879 = vmax.f32 %v797, %v799
        %880 = vmax.xlane.f32.xlu0 %v879
        %v881 = vpop.xlane.xlu0 %880
        %v882 = vmax.f32 %v803, %v805
        %883 = vmax.xlane.f32.xlu0 %v882
        %v884 = vpop.xlane.xlu0 %883
        %v885 = vmax.f32 %v809, %v811
        %886 = vmax.xlane.f32.xlu0 %v885
        %v887 = vpop.xlane.xlu0 %886
        %v888 = vmax.f32 %v815, %v817
        %889 = vmax.xlane.f32.xlu0 %v888
        %v890 = vpop.xlane.xlu0 %889
        %v891 = vmax.f32 %v821, %v823
        %892 = vmax.xlane.f32.xlu0 %v891
        %v893 = vpop.xlane.xlu0 %892
        %v894 = vmax.f32 %v827, %v829
        %895 = vmax.xlane.f32.xlu0 %v894
        %v896 = vpop.xlane.xlu0 %895
        %v897 = vmax.f32 %v833, %v835
        %898 = vmax.xlane.f32.xlu0 %v897
        %v899 = vpop.xlane.xlu0 %898
        %v900 = vmax.f32 %v839, %v841
        %901 = vmax.xlane.f32.xlu0 %v900
        %v902 = vpop.xlane.xlu0 %901
        %v903 = vmax.f32 %v845, %v847
        %904 = vmax.xlane.f32.xlu0 %v903
        %v905 = vpop.xlane.xlu0 %904
        %v906 = vmax.f32 %v851, %v853
        %907 = vmax.xlane.f32.xlu0 %v906
        %v908 = vpop.xlane.xlu0 %907
        %v909 = vmax.f32 %v857, %v859
        %910 = vmax.xlane.f32.xlu0 %v909
        %v911 = vpop.xlane.xlu0 %910
        %v912 = vmax.f32 %v863, %v865
        %913 = vmax.xlane.f32.xlu0 %v912
        %v914 = vpop.xlane.xlu0 %913
        %v915 = vsub.f32 %v773, %v869
        %v916 = vsub.f32 %v775, %v869
        %v917 = vsub.f32 %v779, %v872
        %v918 = vsub.f32 %v781, %v872
        %v919 = vsub.f32 %v785, %v875
        %v920 = vsub.f32 %v787, %v875
        %v921 = vsub.f32 %v791, %v878
        %v922 = vsub.f32 %v793, %v878
        %v923 = vsub.f32 %v797, %v881
        %v924 = vsub.f32 %v799, %v881
        %v925 = vsub.f32 %v803, %v884
        %v926 = vsub.f32 %v805, %v884
        %v927 = vsub.f32 %v809, %v887
        %v928 = vsub.f32 %v811, %v887
        %v929 = vsub.f32 %v815, %v890
        %v930 = vsub.f32 %v817, %v890
        %v931 = vsub.f32 %v821, %v893
        %v932 = vsub.f32 %v823, %v893
        %v933 = vsub.f32 %v827, %v896
        %v934 = vsub.f32 %v829, %v896
        %v935 = vsub.f32 %v833, %v899
        %v936 = vsub.f32 %v835, %v899
        %v937 = vsub.f32 %v839, %v902
        %v938 = vsub.f32 %v841, %v902
        %v939 = vsub.f32 %v845, %v905
        %v940 = vsub.f32 %v847, %v905
        %v941 = vsub.f32 %v851, %v908
        %v942 = vsub.f32 %v853, %v908
        %v943 = vsub.f32 %v857, %v911
        %v944 = vsub.f32 %v859, %v911
        %v945 = vsub.f32 %v863, %v914
        %v946 = vsub.f32 %v865, %v914
        %v947 = vmul.f32 %v915, 1.442695
        %v948 = vpow.pop %v947
        %v949 = vmul.f32 %v916, 1.442695
        %v950 = vpow.pop %v949
        %v951 = vmul.f32 %v917, 1.442695
        %v952 = vpow.pop %v951
        %v953 = vmul.f32 %v918, 1.442695
        %v954 = vpow.pop %v953
        %v955 = vmul.f32 %v919, 1.442695
        %v956 = vpow.pop %v955
        %v957 = vmul.f32 %v920, 1.442695
        %v958 = vpow.pop %v957
        %v959 = vmul.f32 %v921, 1.442695
        %v960 = vpow.pop %v959
        %v961 = vmul.f32 %v922, 1.442695
        %v962 = vpow.pop %v961
        %v963 = vmul.f32 %v923, 1.442695
        %v964 = vpow.pop %v963
        %v965 = vmul.f32 %v924, 1.442695
        %v966 = vpow.pop %v965
        %v967 = vmul.f32 %v925, 1.442695
        %v968 = vpow.pop %v967
        %v969 = vmul.f32 %v926, 1.442695
        %v970 = vpow.pop %v969
        %v971 = vmul.f32 %v927, 1.442695
        %v972 = vpow.pop %v971
        %v973 = vmul.f32 %v928, 1.442695
        %v974 = vpow.pop %v973
        %v975 = vmul.f32 %v929, 1.442695
        %v976 = vpow.pop %v975
        %v977 = vmul.f32 %v930, 1.442695
        %v978 = vpow.pop %v977
        %v979 = vmul.f32 %v931, 1.442695
        %v980 = vpow.pop %v979
        %v981 = vmul.f32 %v932, 1.442695
        %v982 = vpow.pop %v981
        %v983 = vmul.f32 %v933, 1.442695
        %v984 = vpow.pop %v983
        %v985 = vmul.f32 %v934, 1.442695
        %v986 = vpow.pop %v985
        %v987 = vmul.f32 %v935, 1.442695
        %v988 = vpow.pop %v987
        %v989 = vmul.f32 %v936, 1.442695
        %v990 = vpow.pop %v989
        %v991 = vmul.f32 %v937, 1.442695
        %v992 = vpow.pop %v991
        %v993 = vmul.f32 %v938, 1.442695
        %v994 = vpow.pop %v993
        %v995 = vmul.f32 %v939, 1.442695
        %v996 = vpow.pop %v995
        %v997 = vmul.f32 %v940, 1.442695
        %v998 = vpow.pop %v997
        %v999 = vmul.f32 %v941, 1.442695
        %v1000 = vpow.pop %v999
        %v1001 = vmul.f32 %v942, 1.442695
        %v1002 = vpow.pop %v1001
        %v1003 = vmul.f32 %v943, 1.442695
        %v1004 = vpow.pop %v1003
        %v1005 = vmul.f32 %v944, 1.442695
        %v1006 = vpow.pop %v1005
        %v1007 = vmul.f32 %v945, 1.442695
        %v1008 = vpow.pop %v1007
        %v1009 = vmul.f32 %v946, 1.442695
        %v1010 = vpow.pop %v1009
        %v1011 = vpack.c.bf16 %v460, %v454
        %v1012 = vpack.c.bf16 %v462, %v456
        %v1013 = vpack.c.bf16 %v952, %v948
        %v1014 = vpack.c.bf16 %v954, %v950
        %v1015 = vpack.c.bf16 %v960, %v956
        %v1016 = vpack.c.bf16 %v962, %v958
        %v1017 = vpack.c.bf16 %v968, %v964
        %v1018 = vpack.c.bf16 %v970, %v966
        %v1019 = vpack.c.bf16 %v976, %v972
        %v1020 = vpack.c.bf16 %v978, %v974
        %v1021 = vpack.c.bf16 %v984, %v980
        %v1022 = vpack.c.bf16 %v986, %v982
        %v1023 = vpack.c.bf16 %v992, %v988
        %v1024 = vpack.c.bf16 %v994, %v990
        %v1025 = vpack.c.bf16 %v1000, %v996
        %v1026 = vpack.c.bf16 %v1002, %v998
        %v1027 = vpack.c.bf16 %v1008, %v1004
        %v1028 = vpack.c.bf16 %v1010, %v1006
        %1029 = vmatprep.subr.bf16.mxu0 %v1014
        %1030 = vmatpush1.bf16.xpose.msra.mxu0 %v1013
        %1031 = vmatprep.subr.bf16.mxu0 %v1016
        %1032 = vmatpush1.bf16.xpose.msra.mxu0 %v1015
        %1033 = vmatprep.subr.bf16.mxu0 %v1018
        %1034 = vmatpush1.bf16.xpose.msra.mxu0 %v1017
        %1035 = vmatprep.subr.bf16.mxu0 %v1020
        %1036 = vmatpush1.bf16.xpose.msra.mxu0 %v1019
        %1037 = vmatprep.subr.bf16.mxu0 %v1022
        %1038 = vmatpush1.bf16.xpose.msra.mxu0 %v1021
        %1039 = vmatprep.subr.bf16.mxu0 %v1024
        %1040 = vmatpush1.bf16.xpose.msra.mxu0 %v1023
        %1041 = vmatprep.subr.bf16.mxu0 %v1026
        %1042 = vmatpush1.bf16.xpose.msra.mxu0 %v1025
        %1043 = vmatprep.subr.bf16.mxu0 %v1028
        %1044 = vmatpush1.bf16.xpose.msra.mxu0 %v1027
        %1045 = vmatprep.subr.bf16.mxu0 0
        %1046 = vmatpush1.bf16.xpose.msra.mxu0 0
        %1047 = vmatprep.subr.bf16.mxu0 0
        %1048 = vmatpush1.bf16.xpose.msra.mxu0 0
        %1049 = vmatprep.subr.bf16.mxu0 0
        %1050 = vmatpush1.bf16.xpose.msra.mxu0 0
        %1051 = vmatprep.subr.bf16.mxu0 0
        %1052 = vmatpush1.bf16.xpose.msra.mxu0 0
        %1053 = vmatprep.subr.bf16.mxu0 0
        %1054 = vmatpush1.bf16.xpose.msra.mxu0 0
        %1055 = vmatprep.subr.bf16.mxu0 0
        %1056 = vmatpush1.bf16.xpose.msra.mxu0 0
        %1057 = vmatprep.subr.bf16.mxu0 0
        %1058 = vmatpush1.bf16.xpose.msra.mxu0 0
        %1059 = vmatprep.subr.bf16.mxu0 0
        %1060 = vmatpush1.bf16.xpose.msra.mxu0 0
        %1061 = vmatprep.mubr.bf16.mxu0 %v1012
        %1062 = vmatmul.mubr.bf16.gmra.mrb[0].mxu0 %v1011
        %v1063 = vpop.f32.mrb[0].mxu0
        %v1064 = vadd.f32 0.0, %v1063
        %v1065 = vpop.f32.mrb[0].mxu0
        %v1066 = vpop.f32.mrb[0].mxu0
        %v1067 = vadd.f32 0.0, %v1066
        %v1068 = vpop.f32.mrb[0].mxu0
        %1069 = vdwg.mxu0
        %v1070 = vrcp.pop %v1067
        %v1071 = vlaneseq
        %v1072 = vshrl.u32 %v1071, 7
        %v1073 = vsub.s32 0, %v1072
        %v1074 = vrot.slane %v1070, %v1073
        %v1075 = vmul.f32 %v1064, %v1074
        %vm1076 = vcmask 1041409
        %v1077 = vsel %vm1076, %v460, -inf
        %v1078 = vsel %vm1076, %v462, -inf
        %v1079 = vmax.f32 %v1077, %v1078
        %1080 = vmax.xlane.f32.xlu0 %v1079
        %v1081 = vpop.xlane.xlu0 %1080
        %v1082 = vsub.f32 %v460, %v1081
        %v1083 = vsub.f32 %v462, %v1081
        %v1084 = vmul.f32 %v1082, 1.442695
        %v1085 = vpow.pop %v1084
        %v1086 = vmul.f32 %v1083, 1.442695
        %v1087 = vpow.pop %v1086
        %v1088 = vlaneseq
        %v1089 = vshrl.u32 %v1088, 7
        %v1090 = vsub.s32 1, %v1089
        %v1091 = vrot.slane %v1085, %v1090
        %v1092 = vlaneseq
        %v1093 = vshrl.u32 %v1092, 7
        %v1094 = vsub.s32 1, %v1093
        %v1095 = vrot.slane %v1087, %v1094
        %v1096 = vmul.f32 %v454, %v1091
        %v1097 = vmul.f32 %v456, %v1095
        %v1098 = vadd.f32 %v1096, %v1097
        %1099 = vadd.xlane.f32.xlu0 %v1098
        %v1100 = vpop.xlane.xlu0 %1099
        %v1101 = vsel %vm1076, %v1085, 0.0
        %v1102 = vsel %vm1076, %v1087, 0.0
        %v1103 = vadd.f32 %v1101, %v1102
        %1104 = vadd.xlane.f32.xlu0 %v1103
        %v1105 = vpop.xlane.xlu0 %1104
        %v1106 = vrcp.pop %v1105
        %v1107 = vlaneseq
        %v1108 = vshrl.u32 %v1107, 7
        %v1109 = vsub.s32 1, %v1108
        %v1110 = vrot.slane %v1106, %v1109
        %v1111 = vmul.f32 %v1100, %v1110
        %v1112 = vld [vmem:[%s5] sm:$0xff]
        %v1113 = vld [vmem:[%s5 + $0x8] sm:$0xff]
        %v1114 = vld [vmem:[%s6] sm:$0xff]
        %v1115 = vld [vmem:[%s6 + $0x8] sm:$0xff]
        %v1117 = vsel %vm657, %v1114, 0
        %v1120 = vsel %vm657, %v1115, 0
        %1122 = vmatprep.subr.mxu0 0.0
        %1123 = vmatpush1.msra.mxu0 %v1111
        %1124 = vmatprep.subr.mxu0 0.0
        %1125 = vmatpush1.msra.mxu0 0.0
        %1126 = vmatprep.subr.mxu0 0.0
        %1127 = vmatpush1.msra.mxu0 0.0
        %1128 = vmatprep.subr.mxu0 0.0
        %1129 = vmatpush1.msra.mxu0 0.0
        %1130 = vmatprep.subr.mxu0 0.0
        %1131 = vmatpush1.msra.mxu0 0.0
        %1132 = vmatprep.subr.mxu0 0.0
        %1133 = vmatpush1.msra.mxu0 0.0
        %1134 = vmatprep.subr.mxu0 0.0
        %1135 = vmatpush1.msra.mxu0 0.0
        %1136 = vmatprep.subr.mxu0 0.0
        %1137 = vmatpush1.msra.mxu0 0.0
        %1138 = vmatprep.subr.mxu0 0.0
        %1139 = vmatpush1.msra.mxu0 0.0
        %1140 = vmatprep.subr.mxu0 0.0
        %1141 = vmatpush1.msra.mxu0 0.0
        %1142 = vmatprep.subr.mxu0 0.0
        %1143 = vmatpush1.msra.mxu0 0.0
        %1144 = vmatprep.subr.mxu0 0.0
        %1145 = vmatpush1.msra.mxu0 0.0
        %1146 = vmatprep.subr.mxu0 0.0
        %1147 = vmatpush1.msra.mxu0 0.0
        %1148 = vmatprep.subr.mxu0 0.0
        %1149 = vmatpush1.msra.mxu0 0.0
        %1150 = vmatprep.subr.mxu0 0.0
        %1151 = vmatpush1.msra.mxu0 0.0
        %1152 = vmatprep.subr.mxu0 0.0
        %1153 = vmatpush1.msra.mxu0 0.0
        %1154 = vmatprep.subr.mxu0 0.0
        %1155 = vmatpush1.msra.mxu0 0.0
        %1156 = vmatprep.subr.mxu0 0.0
        %1157 = vmatpush1.msra.mxu0 0.0
        %1158 = vmatprep.subr.mxu0 0.0
        %1159 = vmatpush1.msra.mxu0 0.0
        %1160 = vmatprep.subr.mxu0 0.0
        %1161 = vmatpush1.msra.mxu0 0.0
        %1162 = vmatprep.subr.mxu0 0.0
        %1163 = vmatpush1.msra.mxu0 0.0
        %1164 = vmatprep.subr.mxu0 0.0
        %1165 = vmatpush1.msra.mxu0 0.0
        %1166 = vmatprep.subr.mxu0 0.0
        %1167 = vmatpush1.msra.mxu0 0.0
        %1168 = vmatprep.subr.mxu0 0.0
        %1169 = vmatpush1.msra.mxu0 0.0
        %1170 = vmatprep.subr.mxu0 0.0
        %1171 = vmatpush1.msra.mxu0 0.0
        %1172 = vmatprep.subr.mxu0 0.0
        %1173 = vmatpush1.msra.mxu0 0.0
        %1174 = vmatprep.subr.mxu0 0.0
        %1175 = vmatpush1.msra.mxu0 0.0
        %1176 = vmatprep.subr.mxu0 0.0
        %1177 = vmatpush1.msra.mxu0 0.0
        %1178 = vmatprep.subr.mxu0 0.0
        %1179 = vmatpush1.msra.mxu0 0.0
        %1180 = vmatprep.subr.mxu0 0.0
        %1181 = vmatpush1.msra.mxu0 0.0
        %1182 = vmatprep.subr.mxu0 0.0
        %1183 = vmatpush1.msra.mxu0 0.0
        %1184 = vmatprep.subr.mxu0 0.0
        %1185 = vmatpush1.msra.mxu0 0.0
        %1186 = vmatprep.mubr.f32.mxu0 0.0
        %1187 = vmatmul.mubr.f32.gmra.mrb[0].mxu0 %v1117
        %v1188 = vpop.f32.mrb[0].mxu0
        %v1189 = vadd.f32 0.0, %v1188
        %v1190 = vpop.f32.mrb[0].mxu0
        %1191 = vmatprep.mubr.f32.mxu0 0.0
        %1192 = vmatmul.mubr.f32.gmra.mrb[0].mxu0 %v1120
        %v1193 = vpop.f32.mrb[0].mxu0
        %v1194 = vadd.f32 0.0, %v1193
        %v1195 = vpop.f32.mrb[0].mxu0
        %1196 = vdwg.mxu0
        %1198 = vset.pattern.permute.xlu0 0
        %1199 = vperm.xlu0 %1198, %v1189
        %v1200 = vpop.permute.xlu0 %1199
        %1203 = vset.pattern.permute.xlu0 0
        %1204 = vperm.xlu0 %1203, %v1194
        %v1205 = vpop.permute.xlu0 %1204
        %v1208 = vsel %vm657, %v1112, 0
        %v1211 = vsel %vm657, %v1113, 0
        %1213 = vmatprep.subr.mxu0 0.0
        %1214 = vmatpush1.msra.mxu0 %v1075
        %1215 = vmatprep.subr.mxu0 0.0
        %1216 = vmatpush1.msra.mxu0 0.0
        %1217 = vmatprep.subr.mxu0 0.0
        %1218 = vmatpush1.msra.mxu0 0.0
        %1219 = vmatprep.subr.mxu0 0.0
        %1220 = vmatpush1.msra.mxu0 0.0
        %1221 = vmatprep.subr.mxu0 0.0
        %1222 = vmatpush1.msra.mxu0 0.0
        %1223 = vmatprep.subr.mxu0 0.0
        %1224 = vmatpush1.msra.mxu0 0.0
        %1225 = vmatprep.subr.mxu0 0.0
        %1226 = vmatpush1.msra.mxu0 0.0
        %1227 = vmatprep.subr.mxu0 0.0
        %1228 = vmatpush1.msra.mxu0 0.0
        %1229 = vmatprep.subr.mxu0 0.0
        %1230 = vmatpush1.msra.mxu0 0.0
        %1231 = vmatprep.subr.mxu0 0.0
        %1232 = vmatpush1.msra.mxu0 0.0
        %1233 = vmatprep.subr.mxu0 0.0
        %1234 = vmatpush1.msra.mxu0 0.0
        %1235 = vmatprep.subr.mxu0 0.0
        %1236 = vmatpush1.msra.mxu0 0.0
        %1237 = vmatprep.subr.mxu0 0.0
        %1238 = vmatpush1.msra.mxu0 0.0
        %1239 = vmatprep.subr.mxu0 0.0
        %1240 = vmatpush1.msra.mxu0 0.0
        %1241 = vmatprep.subr.mxu0 0.0
        %1242 = vmatpush1.msra.mxu0 0.0
        %1243 = vmatprep.subr.mxu0 0.0
        %1244 = vmatpush1.msra.mxu0 0.0
        %1245 = vmatprep.subr.mxu0 0.0
        %1246 = vmatpush1.msra.mxu0 0.0
        %1247 = vmatprep.subr.mxu0 0.0
        %1248 = vmatpush1.msra.mxu0 0.0
        %1249 = vmatprep.subr.mxu0 0.0
        %1250 = vmatpush1.msra.mxu0 0.0
        %1251 = vmatprep.subr.mxu0 0.0
        %1252 = vmatpush1.msra.mxu0 0.0
        %1253 = vmatprep.subr.mxu0 0.0
        %1254 = vmatpush1.msra.mxu0 0.0
        %1255 = vmatprep.subr.mxu0 0.0
        %1256 = vmatpush1.msra.mxu0 0.0
        %1257 = vmatprep.subr.mxu0 0.0
        %1258 = vmatpush1.msra.mxu0 0.0
        %1259 = vmatprep.subr.mxu0 0.0
        %1260 = vmatpush1.msra.mxu0 0.0
        %1261 = vmatprep.subr.mxu0 0.0
        %1262 = vmatpush1.msra.mxu0 0.0
        %1263 = vmatprep.subr.mxu0 0.0
        %1264 = vmatpush1.msra.mxu0 0.0
        %1265 = vmatprep.subr.mxu0 0.0
        %1266 = vmatpush1.msra.mxu0 0.0
        %1267 = vmatprep.subr.mxu0 0.0
        %1268 = vmatpush1.msra.mxu0 0.0
        %1269 = vmatprep.subr.mxu0 0.0
        %1270 = vmatpush1.msra.mxu0 0.0
        %1271 = vmatprep.subr.mxu0 0.0
        %1272 = vmatpush1.msra.mxu0 0.0
        %1273 = vmatprep.subr.mxu0 0.0
        %1274 = vmatpush1.msra.mxu0 0.0
        %1275 = vmatprep.subr.mxu0 0.0
        %1276 = vmatpush1.msra.mxu0 0.0
        %1277 = vmatprep.mubr.f32.mxu0 0.0
        %1278 = vmatmul.mubr.f32.gmra.mrb[0].mxu0 %v1208
        %v1279 = vpop.f32.mrb[0].mxu0
        %v1280 = vadd.f32 %v1200, %v1279
        %v1281 = vpop.f32.mrb[0].mxu0
        %1282 = vmatprep.mubr.f32.mxu0 0.0
        %1283 = vmatmul.mubr.f32.gmra.mrb[0].mxu0 %v1211
        %v1284 = vpop.f32.mrb[0].mxu0
        %v1285 = vadd.f32 %v1205, %v1284
        %v1286 = vpop.f32.mrb[0].mxu0
        %1287 = vdwg.mxu0
        %v1288 = vadd.f32 %v1280, %v339
        %v1289 = vadd.f32 %v1285, %v340
        %1290 = vst [vmem:[%s328] sm:$0xff] %v1288
        %1291 = vst [vmem:[%s328 + $0x8] sm:$0xff] %v1289
        %s1292 = sand.u32 %s205, 1
        %s1293 = scalar_lea.sflag [#allocation4], %s1292
        %s1294 = sand.u32 %s205, 1
        %s1295 = smul.addr %s1294, 16
        %s1296 = scalar_lea.vmem [#allocation5], %s1295
        // Predicated region
        $region53: #{tpu_custom_call.1} parent=47 // pred_check
          %p1297 = pneg %p215
        $region54: #{tpu_custom_call.1} parent=47 // pred_check_branch
          %1299 = sbr.rel (%p1297) target = $region56
        $region55: #{tpu_custom_call.1} parent=47 // pred_region
          %s1301 = ssub.s32 256, 256
          %1302 = vsyncadd %s1293, %s1301
          %s1303 = smul.addr %s28, 4
          %s1304 = sadd.s32 %s29, %s1303
          %s1305 = smul.addr %s1304, 128
          %s1306 = scalar_lea.hbm %s7, %s1305
          %s1307 = sshll.u32 %s1296, 4
          %s1308 = int_to_ptr.vmem [resolvable:$true] %s1307
          %1313 = dma.vmem_to_hbm [thread:$0]  %s1308, 256, %s1306, %s1293, 128, 256, 8
        $region56: #{tpu_custom_call.1} parent=47 // pred_fallthru
          _
      $region48: #{tpu_custom_call.1} parent=5 // pred_fallthru
        _
      %p1314 = scmp.le.s32.totalorder 2, %s19
      // Predicated region
      $region57: #{tpu_custom_call.1} parent=5 // pred_check
        %p1315 = pneg %p1314
      $region58: #{tpu_custom_call.1} parent=5 // pred_check_branch
        %1317 = sbr.rel (%p1315) target = $region60
      $region59: #{tpu_custom_call.1} parent=5 // pred_region
        %s1318 = ssub.s32 %s19, 2
        // Predicated region
        $region61: #{tpu_custom_call.1} parent=59 // pred_check
          %p1319 = pneg %p221
        $region62: #{tpu_custom_call.1} parent=59 // pred_check_branch
          %1321 = sbr.rel (%p1319) target = $region64
        $region63: #{tpu_custom_call.1} parent=59 // pred_region
          %s1322 = sand.u32 %s206, 1
          %s1323 = scalar_lea.sflag [#allocation4], %s1322
          %s1324 = sand.u32 %s206, 1
          %s1325 = smul.addr %s1324, 16
          %s1326 = scalar_lea.vmem [#allocation5], %s1325
          %1327 = dma.done %s1323, 256
        $region64: #{tpu_custom_call.1} parent=59 // pred_fallthru
          _
      $region60: #{tpu_custom_call.1} parent=5 // pred_fallthru
        _
    $region6: #{tpu_custom_call.1} parent=1 // loop_footer
      %s23 = sadd.s32 1, %s19
    $region7: #{tpu_custom_call.1} parent=1 // loop_footer_branch
      %18 = sbr.rel target = $region3
    $region8: #{tpu_custom_call.1} parent=1 // loop_exit
      _
    %1328 = vsyncpa [#allocation3], 1
    %s1329 = scalar_lea.sflag [#allocation3], 1
    %1330 = vsyncpa %s1329, 1
    %1331 = vsyncpa [#allocation4], 1
    %s1332 = scalar_lea.sflag [#allocation4], 1
    %1333 = vsyncpa %s1332, 1

</llo_original>
